<compile_context>
chip_gen: v7x
topology: tpu7x:2x2x1
jax: 0.10.0
libtpu: 0.0.40
codegen_flags: <defaults>
</compile_context>

<pallas_src>
import functools

import jax
import jax.numpy as jnp
from jax.experimental import pallas as pl
from jax.experimental.pallas import tpu as pltpu

BN_EPS = 1e-5


def _head_kernel(x_ref, w_ref, bias_ref, cls_ref, gfeat_ref, acc_ref, *, inv_hw):
    """One (batch tile, channel tile) step of the Backbone head.

    x_ref:     (TB, TC, HW)   trunk dtype  NCHW feature-map tile (HW on lanes)
    w_ref:     (TC, NUMP)     f32          BN-folded classifier weight tile
    bias_ref:  (1, NUMP)      f32          BN-folded classifier bias
    cls_ref:   (TB, NUMP)                  cls_score output (resident over C)
    gfeat_ref: (TB, TC)                    global_feat output tile
    acc_ref:   (TB, NUMP)     f32 VMEM     classifier accumulator scratch
    """
    ci = pl.program_id(1)

    @pl.when(ci == 0)
    def _():
        acc_ref[...] = jnp.zeros_like(acc_ref)

    # Global average pool over the spatial (lane) axis, accumulated in f32.
    x = x_ref[...].astype(jnp.float32)              # (TB, TC, HW)
    gf = jnp.sum(x, axis=-1) * inv_hw               # (TB, TC)
    gfeat_ref[...] = gf.astype(gfeat_ref.dtype)

    # Partial classifier matmul for this channel tile (BN folded into W/bias).
    acc_ref[...] += jnp.dot(gf, w_ref[...], preferred_element_type=jnp.float32)

    @pl.when(ci == pl.num_programs(1) - 1)
    def _():
        cls_ref[...] = (acc_ref[...] + bias_ref[...]).astype(cls_ref.dtype)


def backbone_head(x_nchw, gamma, beta, running_mean, running_var, w_cls,
                  *, tb=None, tc=None):
    """NCHW trunk feature map -> (cls_score, global_feat).

    x_nchw : (B, C, H, W)   trunk output (any float dtype; kept as-is)
    w_cls  : (num_classes, C)  PyTorch Linear weight layout (bias=False)
    """
    B, C, H, W = x_nchw.shape
    HW = H * W
    num_classes = w_cls.shape[0]

    # NCHW consumed directly: collapsing (H, W) -> HW is a view, no transpose.
    x = x_nchw.reshape(B, C, HW)
    in_itemsize = jnp.dtype(x.dtype).itemsize
    out_dtype = x_nchw.dtype
    out_itemsize = jnp.dtype(out_dtype).itemsize

    # ---- Fold BN (inference, running stats) into the classifier (one-time XLA).
    gamma_f = gamma.astype(jnp.float32)
    beta_f = beta.astype(jnp.float32)
    mean_f = running_mean.astype(jnp.float32)
    var_f = running_var.astype(jnp.float32)
    scale = gamma_f * jax.lax.rsqrt(var_f + BN_EPS)          # (C,)
    shift = beta_f - mean_f * scale                          # (C,)
    w_t = jnp.transpose(w_cls).astype(jnp.float32)           # (C, num_classes)
    w_folded = scale[:, None] * w_t                          # (C, num_classes)
    bias_folded = shift @ w_t                                # (num_classes,)

    # ---- Pad classifier output dim to a lane-dense multiple of 128.
    nump = max(128, ((num_classes + 127) // 128) * 128)
    if nump != num_classes:
        w_folded = jnp.pad(w_folded, ((0, 0), (0, nump - num_classes)))
        bias_folded = jnp.pad(bias_folded, (0, nump - num_classes))
    bias2 = bias_folded.reshape(1, nump)

    # ---- Tile sizes (batch tile must be 8-aligned or the full batch;
    #      channel tile must be 8-aligned and divide C).
    if tb is None:
        tb = 8 if (B > 8 and B % 8 == 0) else B
    if tc is None:
        tc = C
        for cand in (512, 256, 128):
            if C >= cand and C % cand == 0:
                tc = cand
                break
    assert B % tb == 0 and C % tc == 0, "tile sizes must divide (B, C)"

    grid = (B // tb, C // tc)

    kernel = functools.partial(_head_kernel, inv_hw=float(1.0 / HW))

    # ---- Advisory cost estimate (head is HBM-bound on x).
    cost = pl.CostEstimate(
        flops=2 * B * C * nump + B * C * HW,
        transcendentals=0,
        bytes_accessed=(B * C * HW * in_itemsize          # x
                        + C * nump * 4 + nump * 4         # folded W, bias
                        + B * nump * out_itemsize         # cls_score
                        + B * C * out_itemsize),          # global_feat
    )

    # ---- VMEM budget: double-buffered tiles + resident outputs + accumulator.
    vmem_needed = (2 * tb * tc * HW * in_itemsize     # x tiles
                   + 2 * tc * nump * 4                # W' tiles
                   + 2 * nump * 4                     # bias
                   + 2 * tb * nump * out_itemsize     # cls out
                   + 2 * tb * tc * out_itemsize       # gfeat out
                   + tb * nump * 4)                   # accumulator scratch
    vmem_limit = int(min(48 * 2 ** 20, max(32 * 2 ** 20, 2 * vmem_needed)))

    cls_padded, global_feat = pl.pallas_call(
        kernel,
        out_shape=(
            jax.ShapeDtypeStruct((B, nump), out_dtype),
            jax.ShapeDtypeStruct((B, C), out_dtype),
        ),
        grid=grid,
        in_specs=[
            pl.BlockSpec((tb, tc, HW), lambda bi, ci: (bi, ci, 0)),   # x
            pl.BlockSpec((tc, nump), lambda bi, ci: (ci, 0)),         # W'
            pl.BlockSpec((1, nump), lambda bi, ci: (0, 0)),           # bias'
        ],
        out_specs=(
            pl.BlockSpec((tb, nump), lambda bi, ci: (bi, 0)),         # cls (resident over C)
            pl.BlockSpec((tb, tc), lambda bi, ci: (bi, ci)),          # global_feat
        ),
        scratch_shapes=[pltpu.VMEM((tb, nump), jnp.float32)],
        compiler_params=pltpu.CompilerParams(
            dimension_semantics=("parallel", "arbitrary"),
            vmem_limit_bytes=vmem_limit),
        cost_estimate=cost,
    )(x, w_folded, bias2)

    cls_score = cls_padded[:, :num_classes]
    return cls_score, global_feat


def reference_head(x_nchw, gamma, beta, running_mean, running_var, w_cls):
    """Pure-JAX reference mirroring the PyTorch forward (training branch)."""
    gf = jnp.mean(x_nchw.astype(jnp.float32), axis=(2, 3))              # (B, C)
    feat = (gf - running_mean) / jnp.sqrt(running_var + BN_EPS) * gamma + beta
    cls = feat @ w_cls.T                                                # (B, num)
    return cls, gf


if __name__ == "__main__":
    key = jax.random.PRNGKey(0)

    # Small synthetic shapes consistent with the module (real model:
    # in_planes=2048, HW from ResNet50; scaled down here but with grid > 1).
    B, C, H, W = 4, 256, 8, 8
    num_classes = 16

    k_x, k_w, k_m, k_v = jax.random.split(key, 4)

    # trunk (self.base) output feature map, NCHW
    x = jax.random.normal(k_x, (B, C, H, W), dtype=jnp.float32)

    # classifier: nn.Linear(in_planes, num_classes, bias=False),
    # weights_init_classifier -> normal(std=0.001)
    w_cls = 0.001 * jax.random.normal(k_w, (num_classes, C), dtype=jnp.float32)

    # bottleneck: nn.BatchNorm1d(in_planes), weights_init_kaiming -> gamma=1, beta=0
    gamma = jnp.ones((C,), dtype=jnp.float32)
    beta = jnp.zeros((C,), dtype=jnp.float32)
    # running stats: deterministic nontrivial values (simulating a trained BN)
    running_mean = 0.1 * jax.random.normal(k_m, (C,), dtype=jnp.float32)
    running_var = 1.0 + 0.05 * jax.random.uniform(k_v, (C,), dtype=jnp.float32)

    # tc=128 so the channel-reduction grid axis (accumulator path) is exercised.
    cls_score, global_feat = backbone_head(
        x, gamma, beta, running_mean, running_var, w_cls, tc=128)
    jax.block_until_ready((cls_score, global_feat))

    ref_cls, ref_gf = reference_head(
        x, gamma, beta, running_mean, running_var, w_cls)

    assert cls_score.shape == (B, num_classes)
    assert global_feat.shape == (B, C)
    assert jnp.allclose(cls_score, ref_cls, atol=1e-5, rtol=1e-5)
    assert jnp.allclose(global_feat, ref_gf, atol=1e-5, rtol=1e-5)

    print("KERNEL_OK")
</pallas_src>

<mosaic_0001>
module attributes {stable_mosaic.version = 11 : i64} {
  func.func @_head_kernel(%arg0: i32, %arg1: i32, %arg2: memref<4x128x64xf32, #tpu.memory_space<vmem>>, %arg3: memref<128x128xf32, #tpu.memory_space<vmem>>, %arg4: memref<1x128xf32, #tpu.memory_space<vmem>>, %arg5: memref<4x128xf32, #tpu.memory_space<vmem>>, %arg6: memref<4x128xf32, #tpu.memory_space<vmem>>, %arg7: memref<4x128xf32, #tpu.memory_space<vmem>>) attributes {dimension_semantics = [#tpu.dimension_semantics<parallel>, #tpu.dimension_semantics<arbitrary>], iteration_bounds = array<i64: 1, 2>, scalar_prefetch = 0 : i64, scratch_operands = 1 : i64, tpu.core_type = #tpu.core_type<tc>, window_params = [{transform_indices = @transform_0, window_bounds = array<i64: 4, 128, 64>}, {transform_indices = @transform_1, window_bounds = array<i64: 128, 128>}, {pipeline_mode = #tpu.pipeline_mode<synchronous>, transform_indices = @transform_2, window_bounds = array<i64: 1, 128>}, {transform_indices = @transform_3, window_bounds = array<i64: 4, 128>}, {transform_indices = @transform_4, window_bounds = array<i64: 4, 128>}]} {
    %c0_i32 = arith.constant 0 : i32
    %0 = arith.cmpi eq, %arg1, %c0_i32 : i32
    %1 = arith.extui %0 : i1 to i32
    %c0_i32_0 = arith.constant 0 : i32
    %2 = arith.cmpi ne, %1, %c0_i32_0 : i32
    scf.if %2 {
      %cst_14 = arith.constant 0.000000e+00 : f32
      %16 = vector.broadcast %cst_14 : f32 to vector<4x128xf32>
      %c0_15 = arith.constant 0 : index
      %c0_16 = arith.constant 0 : index
      %17 = vector.load %arg7[%c0_15, %c0_16] : memref<4x128xf32, #tpu.memory_space<vmem>>, vector<4x128xf32>
      tpu.vector_store %arg7[%c0_15, %c0_16], %16 {strides = array<i32>} : memref<4x128xf32, #tpu.memory_space<vmem>>, vector<4x128xf32>,
    } else {
    }
    %c0 = arith.constant 0 : index
    %c0_1 = arith.constant 0 : index
    %c0_2 = arith.constant 0 : index
    %3 = vector.load %arg2[%c0, %c0_1, %c0_2] : memref<4x128x64xf32, #tpu.memory_space<vmem>>, vector<4x128x64xf32>
    %cst = arith.constant dense<0.000000e+00> : vector<4x128xf32>
    %4 = vector.multi_reduction <add>, %3, %cst [2] : vector<4x128x64xf32> to vector<4x128xf32>
    %cst_3 = arith.constant 1.562500e-02 : f32
    %5 = vector.broadcast %cst_3 : f32 to vector<4x128xf32>
    %6 = arith.mulf %4, %5 : vector<4x128xf32>
    %c0_4 = arith.constant 0 : index
    %c0_5 = arith.constant 0 : index
    %7 = vector.load %arg6[%c0_4, %c0_5] : memref<4x128xf32, #tpu.memory_space<vmem>>, vector<4x128xf32>
    tpu.vector_store %arg6[%c0_4, %c0_5], %6 {strides = array<i32>} : memref<4x128xf32, #tpu.memory_space<vmem>>, vector<4x128xf32>,
    %c0_6 = arith.constant 0 : index
    %c0_7 = arith.constant 0 : index
    %8 = vector.load %arg7[%c0_6, %c0_7] : memref<4x128xf32, #tpu.memory_space<vmem>>, vector<4x128xf32>
    %c0_8 = arith.constant 0 : index
    %c0_9 = arith.constant 0 : index
    %9 = vector.load %arg3[%c0_8, %c0_9] : memref<128x128xf32, #tpu.memory_space<vmem>>, vector<128x128xf32>
    %cst_10 = arith.constant dense<0.000000e+00> : vector<4x128xf32>
    %10 = tpu.matmul %6, %9, %cst_10 {dimension_numbers = #tpu.dot_dimension_numbers<[1], [0], [0], [1], [0, 0, 1, 1], [], []>} : vector<4x128xf32>, vector<128x128xf32>, vector<4x128xf32> -> vector<4x128xf32>
    %11 = arith.addf %8, %10 : vector<4x128xf32>
    %c0_11 = arith.constant 0 : index
    %c0_12 = arith.constant 0 : index
    %12 = vector.load %arg7[%c0_11, %c0_12] : memref<4x128xf32, #tpu.memory_space<vmem>>, vector<4x128xf32>
    tpu.vector_store %arg7[%c0_11, %c0_12], %11 {strides = array<i32>} : memref<4x128xf32, #tpu.memory_space<vmem>>, vector<4x128xf32>,
    %c1_i32 = arith.constant 1 : i32
    %13 = arith.cmpi eq, %arg1, %c1_i32 : i32
    %14 = arith.extui %13 : i1 to i32
    %c0_i32_13 = arith.constant 0 : i32
    %15 = arith.cmpi ne, %14, %c0_i32_13 : i32
    scf.if %15 {
      %c0_14 = arith.constant 0 : index
      %c0_15 = arith.constant 0 : index
      %16 = vector.load %arg7[%c0_14, %c0_15] : memref<4x128xf32, #tpu.memory_space<vmem>>, vector<4x128xf32>
      %c0_16 = arith.constant 0 : index
      %c0_17 = arith.constant 0 : index
      %17 = vector.load %arg4[%c0_16, %c0_17] : memref<1x128xf32, #tpu.memory_space<vmem>>, vector<1x128xf32>
      %18 = vector.broadcast %17 : vector<1x128xf32> to vector<4x128xf32>
      %19 = arith.addf %16, %18 : vector<4x128xf32>
      %c0_18 = arith.constant 0 : index
      %c0_19 = arith.constant 0 : index
      %20 = vector.load %arg5[%c0_18, %c0_19] : memref<4x128xf32, #tpu.memory_space<vmem>>, vector<4x128xf32>
      tpu.vector_store %arg5[%c0_18, %c0_19], %19 {strides = array<i32>} : memref<4x128xf32, #tpu.memory_space<vmem>>, vector<4x128xf32>,
    } else {
    }
    return
  }
  func.func @transform_0(%arg0: i32, %arg1: i32) -> (i32, i32, i32) {
    %c0_i32 = arith.constant 0 : i32
    %c0_i32_0 = arith.constant 0 : i32
    return %arg0, %arg1, %c0_i32 : i32, i32, i32
  }
  func.func @transform_1(%arg0: i32, %arg1: i32) -> (i32, i32) {
    %c0_i32 = arith.constant 0 : i32
    %c0_i32_0 = arith.constant 0 : i32
    return %arg1, %c0_i32 : i32, i32
  }
  func.func @transform_2(%arg0: i32, %arg1: i32) -> (i32, i32) {
    %c0_i32 = arith.constant 0 : i32
    %c0_i32_0 = arith.constant 0 : i32
    %c0_i32_1 = arith.constant 0 : i32
    return %c0_i32, %c0_i32_0 : i32, i32
  }
  func.func @transform_3(%arg0: i32, %arg1: i32) -> (i32, i32) {
    %c0_i32 = arith.constant 0 : i32
    %c0_i32_0 = arith.constant 0 : i32
    return %arg0, %c0_i32 : i32, i32
  }
  func.func @transform_4(%arg0: i32, %arg1: i32) -> (i32, i32) {
    %c0_i32 = arith.constant 0 : i32
    return %arg0, %arg1 : i32, i32
  }
}

</mosaic_0001>

<llo_original>
// kernel: tpu_custom_call.1
$region0: #{tpu_custom_call.1}
  #allocation0 [shape = 'u32[]', space=smem, size = 0x4, offset = 0x4, fixed_abs, tag = 'smem constant byte address 0x4 - core index']
  #allocation1 [shape = 'u32[144,128]{1,0:T(1,128)}', space=vmem, size = 0x12000, scoped, tag = 'internal scratch']
  #allocation2 [shape = 'f32[4,128]{1,0:T(4,128)}', space=vmem, size = 0x800, scoped, tag = 'scratch operand']
  %s0 = inlined_call_operand.vmem [shape: f32[4,256,64], index: 0, kind: input, shape index: {}]
  %s1 = inlined_call_operand.vmem [shape: f32[256,128], index: 1, kind: input, shape index: {}]
  %s2 = inlined_call_operand.vmem [shape: f32[1,128], index: 2, kind: input, shape index: {}]
  %s3 = inlined_call_operand.hbm [shape: f32[4,128], index: 3, kind: output, shape index: {0}]
  %s4 = inlined_call_operand.hbm [shape: f32[4,256], index: 4, kind: output, shape index: {1}]
  %5 = xla_tuple %s3, %s4
  %s6 = sld [smem:[#allocation0]]
  $region99: #{tpu_custom_call.1} parent=0
    _
  %s8 = ssub.s32 1, %s6
  %s9 = scalar_select 0, %s8, %s6
  $region1: #{tpu_custom_call.1} parent=0
    #allocation3 [shape = 'u8[524288]{0}', space=vmem, size = 0x80000, scoped, tag = 'input window, operand 0']
    #allocation4 [shape = 'u8[2048]{0}', space=vmem, size = 0x800, scoped, tag = 'output window, operand 0, single buffered']
    #allocation5 [shape = 's32[2]{0}', space=sflag, size = 0x8, scoped, tag = 'scoped memory for tpu_custom_call.1']
    #allocation6 [shape = 'u8[4096]{0}', space=vmem, size = 0x1000, scoped, tag = 'output window, operand 1']
    #allocation7 [shape = 's32[2]{0}', space=sflag, size = 0x8, scoped, tag = 'scoped memory for tpu_custom_call.1']
    %10 = vsyncpa [#allocation5], 0
    %11 = vsyncpa [#allocation7], 0
    %s12 = scalar_lea.sflag [#allocation7], 1
    %13 = vsyncpa %s12, 0
    loop: start=0, step=1, limit=4
    $region2: #{tpu_custom_call.1} parent=1 // loop_pre_header
      _
    $region3: #{tpu_custom_call.1} parent=1 // loop_header
      %s15 = sphi 0, %s19
      %p16 = scmp.ge.s32.totalorder %s15, 4
      %s22 = sphi 0, %s34
      %s23 = sphi 0, %s30
      %s24 = sphi 0, %s22
      %s25 = sphi 0, %s23
      %s26 = sphi 0, %s24
      %s27 = sphi 0, %s25
      %s39 = sphi 0, %s41
      %s42 = sphi 0, %s39
      %s43 = sphi 0, %s42
      %s59 = sphi 0, %s43
      %s65 = sphi 0, %s67
      %s68 = sphi 0, %s65
      %s69 = sphi 0, %s68
      %s85 = sphi 0, %s69
      %s89 = sphi 0, %s89
      %s91 = sphi 0, %s89
      %s92 = sphi 0, %s91
      %s106 = sphi 0, %s92
      %s112 = sphi 0, %s114
      %s115 = sphi 0, %s112
      %s116 = sphi 0, %s115
      %s132 = sphi 0, %s116
      %s140 = sphi 0, %s142
      %s143 = sphi 0, %s140
      %s144 = sphi 0, %s143
      %s160 = sphi 0, %s144
    $region4: #{tpu_custom_call.1} parent=1 // loop_header_branch
      %18 = sbr.rel (%p16) target = $region8
    $region5: #{tpu_custom_call.1} parent=1 // loop_body
      %s20 = ssub.s32 %s15, 1
      %s21 = ssub.s32 %s15, 2
      %s28 = sadd.s32 1, %s23
      %p29 = scmp.ge.s32.totalorder %s28, 2
      %s30 = scalar_select %p29, 0, %s28
      %s31 = sadd.s32 1, %s22
      %s32 = scalar_select %p29, %s31, %s22
      %p33 = scmp.ge.s32.totalorder %s32, 1
      %s34 = scalar_select %p33, 0, %s32
      %s35 = ssub.s32 %s22, %s34
      %s36 = ssub.s32 %s23, %s30
      %s37 = sor.u32 %s35, %s36
      %p38 = scmp.eq.s32.totalorder %s37, 0
      %s40 = sadd.s32 %s39, 1
      %s41 = scalar_select %p38, %s39, %s40
      %p44 = pneg %p38
      %p45 = scmp.eq.s32.totalorder %s15, 1
      %p46 = por %p44, %p45
      %p47 = scmp.ne.s32.totalorder %s39, %s42
      %p48 = scmp.eq.s32.totalorder %s15, 0
      %p49 = por %p47, %p48
      %p50 = scmp.ne.s32.totalorder %s39, %s42
      %p51 = scmp.eq.s32.totalorder %s20, 1
      %p52 = por %p50, %p51
      %p53 = scmp.ne.s32.totalorder %s42, %s43
      %p54 = scmp.eq.s32.totalorder %s20, 0
      %p55 = por %p53, %p54
      %p56 = scmp.ne.s32.totalorder %s42, %s43
      %p57 = scmp.eq.s32.totalorder %s21, 1
      %p58 = por %p56, %p57
      %p60 = scmp.ne.s32.totalorder %s43, %s59
      %p61 = scmp.eq.s32.totalorder %s21, 0
      %p62 = por %p60, %p61
      %s63 = ssub.s32 %s23, %s30
      %p64 = scmp.eq.s32.totalorder %s63, 0
      %s66 = sadd.s32 %s65, 1
      %s67 = scalar_select %p64, %s65, %s66
      %p70 = pneg %p64
      %p71 = scmp.eq.s32.totalorder %s15, 1
      %p72 = por %p70, %p71
      %p73 = scmp.ne.s32.totalorder %s65, %s68
      %p74 = scmp.eq.s32.totalorder %s15, 0
      %p75 = por %p73, %p74
      %p76 = scmp.ne.s32.totalorder %s65, %s68
      %p77 = scmp.eq.s32.totalorder %s20, 1
      %p78 = por %p76, %p77
      %p79 = scmp.ne.s32.totalorder %s68, %s69
      %p80 = scmp.eq.s32.totalorder %s20, 0
      %p81 = por %p79, %p80
      %p82 = scmp.ne.s32.totalorder %s68, %s69
      %p83 = scmp.eq.s32.totalorder %s21, 1
      %p84 = por %p82, %p83
      %p86 = scmp.ne.s32.totalorder %s69, %s85
      %p87 = scmp.eq.s32.totalorder %s21, 0
      %p88 = por %p86, %p87
      %s90 = sadd.s32 %s89, 1
      %p93 = scmp.eq.s32.totalorder %s15, 1
      %p94 = scmp.ne.s32.totalorder %s89, %s91
      %p95 = scmp.eq.s32.totalorder %s15, 0
      %p96 = por %p94, %p95
      %p97 = scmp.ne.s32.totalorder %s89, %s91
      %p98 = scmp.eq.s32.totalorder %s20, 1
      %p99 = por %p97, %p98
      %p100 = scmp.ne.s32.totalorder %s91, %s92
      %p101 = scmp.eq.s32.totalorder %s20, 0
      %p102 = por %p100, %p101
      %p103 = scmp.ne.s32.totalorder %s91, %s92
      %p104 = scmp.eq.s32.totalorder %s21, 1
      %p105 = por %p103, %p104
      %p107 = scmp.ne.s32.totalorder %s92, %s106
      %p108 = scmp.eq.s32.totalorder %s21, 0
      %p109 = por %p107, %p108
      %s110 = ssub.s32 %s22, %s34
      %p111 = scmp.eq.s32.totalorder %s110, 0
      %s113 = sadd.s32 %s112, 1
      %s114 = scalar_select %p111, %s112, %s113
      %p117 = pneg %p111
      %p118 = scmp.eq.s32.totalorder %s15, 1
      %p119 = por %p117, %p118
      %p120 = scmp.ne.s32.totalorder %s112, %s115
      %p121 = scmp.eq.s32.totalorder %s15, 0
      %p122 = por %p120, %p121
      %p123 = scmp.ne.s32.totalorder %s112, %s115
      %p124 = scmp.eq.s32.totalorder %s20, 1
      %p125 = por %p123, %p124
      %p126 = scmp.ne.s32.totalorder %s115, %s116
      %p127 = scmp.eq.s32.totalorder %s20, 0
      %p128 = por %p126, %p127
      %p129 = scmp.ne.s32.totalorder %s115, %s116
      %p130 = scmp.eq.s32.totalorder %s21, 1
      %p131 = por %p129, %p130
      %p133 = scmp.ne.s32.totalorder %s116, %s132
      %p134 = scmp.eq.s32.totalorder %s21, 0
      %p135 = por %p133, %p134
      %s136 = ssub.s32 %s22, %s34
      %s137 = ssub.s32 %s23, %s30
      %s138 = sor.u32 %s136, %s137
      %p139 = scmp.eq.s32.totalorder %s138, 0
      %s141 = sadd.s32 %s140, 1
      %s142 = scalar_select %p139, %s140, %s141
      %p145 = pneg %p139
      %p146 = scmp.eq.s32.totalorder %s15, 1
      %p147 = por %p145, %p146
      %p148 = scmp.ne.s32.totalorder %s140, %s143
      %p149 = scmp.eq.s32.totalorder %s15, 0
      %p150 = por %p148, %p149
      %p151 = scmp.ne.s32.totalorder %s140, %s143
      %p152 = scmp.eq.s32.totalorder %s20, 1
      %p153 = por %p151, %p152
      %p154 = scmp.ne.s32.totalorder %s143, %s144
      %p155 = scmp.eq.s32.totalorder %s20, 0
      %p156 = por %p154, %p155
      %p157 = scmp.ne.s32.totalorder %s143, %s144
      %p158 = scmp.eq.s32.totalorder %s21, 1
      %p159 = por %p157, %p158
      %p161 = scmp.ne.s32.totalorder %s144, %s160
      %p162 = scmp.eq.s32.totalorder %s21, 0
      %p163 = por %p161, %p162
      %p164 = scmp.le.s32.totalorder 1, %s15
      %p165 = scmp.lt.s32.totalorder %s15, 3
      %p166 = pnand %p164, %p165
      %p167 = pneg %p166
      // Predicated region
      $region9: #{tpu_custom_call.1} parent=5 // pred_check
        _
      $region10: #{tpu_custom_call.1} parent=5 // pred_check_branch
        %169 = sbr.rel (%p166) target = $region12
      $region11: #{tpu_custom_call.1} parent=5 // pred_region
        %s170 = ssub.s32 %s15, 1
        // Predicated region
        $region13: #{tpu_custom_call.1} parent=11 // pred_check
          %p171 = pneg %p102
        $region14: #{tpu_custom_call.1} parent=11 // pred_check_branch
          %173 = sbr.rel (%p171) target = $region16
        $region15: #{tpu_custom_call.1} parent=11 // pred_region
          _
        $region16: #{tpu_custom_call.1} parent=11 // pred_fallthru
          _
      $region12: #{tpu_custom_call.1} parent=5 // pred_fallthru
        _
      %p174 = scmp.lt.s32.totalorder %s15, 2
      // Predicated region
      $region17: #{tpu_custom_call.1} parent=5 // pred_check
        %p175 = pneg %p174
      $region18: #{tpu_custom_call.1} parent=5 // pred_check_branch
        %177 = sbr.rel (%p175) target = $region20
      $region19: #{tpu_custom_call.1} parent=5 // pred_region
        // Predicated region
        $region21: #{tpu_custom_call.1} parent=19 // pred_check
          %p178 = pneg %p49
        $region22: #{tpu_custom_call.1} parent=19 // pred_check_branch
          %180 = sbr.rel (%p178) target = $region24
        $region23: #{tpu_custom_call.1} parent=19 // pred_region
          %s181 = sand.u32 %s39, 1
          %s182 = sand.u32 %s39, 1
          %s183 = smul.addr %s182, 512
          %s184 = scalar_lea.vmem [#allocation3], %s183
          %s185 = smul.u32 4, %s22
          %s186 = smul.u32 16, %s23
          %s187 = smul.addr %s185, 32
          %s188 = sadd.s32 %s186, %s187
          %s189 = smul.addr %s188, 8
          %s190 = scalar_lea.vmem %s0, %s189
          // Predicated region
          $region25: #{tpu_custom_call.1} parent=23 // pred_check
            _
          $region26: #{tpu_custom_call.1} parent=23 // pred_check_branch
            %192 = sbr.rel (0) target = $region28
          $region27: #{tpu_custom_call.1} parent=23 // pred_region
            // Predicated region
            $region29: #{tpu_custom_call.1} parent=27 // pred_check
              _
            $region30: #{tpu_custom_call.1} parent=27 // pred_check_branch
              %194 = sbr.rel (0) target = $region32
            $region31: #{tpu_custom_call.1} parent=27 // pred_region
              // Predicated region
              $region44: #{tpu_custom_call.1} parent=31 // pred_check
                _
              $region45: #{tpu_custom_call.1} parent=31 // pred_check_branch
                %335 = sbr.rel (0) target = $region47
              $region46: #{tpu_custom_call.1} parent=31 // pred_region
                loop: start=0, step=1, limit=1
                $region48: #{tpu_custom_call.1} parent=46 // loop_pre_header
                  _
                $region49: #{tpu_custom_call.1} parent=46 // loop_header
                  %s337 = sphi 0, %s341
                  %p338 = scmp.ge.s32.totalorder %s337, 1
                  %s342 = sphi %s190, %s190
                  %s343 = sphi %s184, %s184
                $region50: #{tpu_custom_call.1} parent=46 // loop_header_branch
                  %340 = sbr.rel (%p338) target = $region54
                $region51: #{tpu_custom_call.1} parent=46 // loop_body
                  %v344 = vld [vmem:[%s342] sm:$0xff]
                  %345 = vst [vmem:[%s343] sm:$0xff] %v344
                  %v346 = vld [vmem:[%s342 + $0x8] sm:$0xff]
                  %347 = vst [vmem:[%s343 + $0x8] sm:$0xff] %v346
                  %v348 = vld [vmem:[%s342 + $0x10] sm:$0xff]
                  %349 = vst [vmem:[%s343 + $0x10] sm:$0xff] %v348
                  %v350 = vld [vmem:[%s342 + $0x18] sm:$0xff]
                  %351 = vst [vmem:[%s343 + $0x18] sm:$0xff] %v350
                  %v352 = vld [vmem:[%s342 + $0x20] sm:$0xff]
                  %353 = vst [vmem:[%s343 + $0x20] sm:$0xff] %v352
                  %v354 = vld [vmem:[%s342 + $0x28] sm:$0xff]
                  %355 = vst [vmem:[%s343 + $0x28] sm:$0xff] %v354
                  %v356 = vld [vmem:[%s342 + $0x30] sm:$0xff]
                  %357 = vst [vmem:[%s343 + $0x30] sm:$0xff] %v356
                  %v358 = vld [vmem:[%s342 + $0x38] sm:$0xff]
                  %359 = vst [vmem:[%s343 + $0x38] sm:$0xff] %v358
                  %v360 = vld [vmem:[%s342 + $0x40] sm:$0xff]
                  %361 = vst [vmem:[%s343 + $0x40] sm:$0xff] %v360
                  %v362 = vld [vmem:[%s342 + $0x48] sm:$0xff]
                  %363 = vst [vmem:[%s343 + $0x48] sm:$0xff] %v362
                  %v364 = vld [vmem:[%s342 + $0x50] sm:$0xff]
                  %365 = vst [vmem:[%s343 + $0x50] sm:$0xff] %v364
                  %v366 = vld [vmem:[%s342 + $0x58] sm:$0xff]
                  %367 = vst [vmem:[%s343 + $0x58] sm:$0xff] %v366
                  %v368 = vld [vmem:[%s342 + $0x60] sm:$0xff]
                  %369 = vst [vmem:[%s343 + $0x60] sm:$0xff] %v368
                  %v370 = vld [vmem:[%s342 + $0x68] sm:$0xff]
                  %371 = vst [vmem:[%s343 + $0x68] sm:$0xff] %v370
                  %v372 = vld [vmem:[%s342 + $0x70] sm:$0xff]
                  %373 = vst [vmem:[%s343 + $0x70] sm:$0xff] %v372
                  %v374 = vld [vmem:[%s342 + $0x78] sm:$0xff]
                  %375 = vst [vmem:[%s343 + $0x78] sm:$0xff] %v374
                  %v376 = vld [vmem:[%s342 + $0x100] sm:$0xff]
                  %377 = vst [vmem:[%s343 + $0x80] sm:$0xff] %v376
                  %v378 = vld [vmem:[%s342 + $0x108] sm:$0xff]
                  %379 = vst [vmem:[%s343 + $0x88] sm:$0xff] %v378
                  %v380 = vld [vmem:[%s342 + $0x110] sm:$0xff]
                  %381 = vst [vmem:[%s343 + $0x90] sm:$0xff] %v380
                  %v382 = vld [vmem:[%s342 + $0x118] sm:$0xff]
                  %383 = vst [vmem:[%s343 + $0x98] sm:$0xff] %v382
                  %v384 = vld [vmem:[%s342 + $0x120] sm:$0xff]
                  %385 = vst [vmem:[%s343 + $0xa0] sm:$0xff] %v384
                  %v386 = vld [vmem:[%s342 + $0x128] sm:$0xff]
                  %387 = vst [vmem:[%s343 + $0xa8] sm:$0xff] %v386
                  %v388 = vld [vmem:[%s342 + $0x130] sm:$0xff]
                  %389 = vst [vmem:[%s343 + $0xb0] sm:$0xff] %v388
                  %v390 = vld [vmem:[%s342 + $0x138] sm:$0xff]
                  %391 = vst [vmem:[%s343 + $0xb8] sm:$0xff] %v390
                  %v392 = vld [vmem:[%s342 + $0x140] sm:$0xff]
                  %393 = vst [vmem:[%s343 + $0xc0] sm:$0xff] %v392
                  %v394 = vld [vmem:[%s342 + $0x148] sm:$0xff]
                  %395 = vst [vmem:[%s343 + $0xc8] sm:$0xff] %v394
                  %v396 = vld [vmem:[%s342 + $0x150] sm:$0xff]
                  %397 = vst [vmem:[%s343 + $0xd0] sm:$0xff] %v396
                  %v398 = vld [vmem:[%s342 + $0x158] sm:$0xff]
                  %399 = vst [vmem:[%s343 + $0xd8] sm:$0xff] %v398
                  %v400 = vld [vmem:[%s342 + $0x160] sm:$0xff]
                  %401 = vst [vmem:[%s343 + $0xe0] sm:$0xff] %v400
                  %v402 = vld [vmem:[%s342 + $0x168] sm:$0xff]
                  %403 = vst [vmem:[%s343 + $0xe8] sm:$0xff] %v402
                  %v404 = vld [vmem:[%s342 + $0x170] sm:$0xff]
                  %405 = vst [vmem:[%s343 + $0xf0] sm:$0xff] %v404
                  %v406 = vld [vmem:[%s342 + $0x178] sm:$0xff]
                  %407 = vst [vmem:[%s343 + $0xf8] sm:$0xff] %v406
                  %v408 = vld [vmem:[%s342 + $0x200] sm:$0xff]
                  %409 = vst [vmem:[%s343 + $0x100] sm:$0xff] %v408
                  %v410 = vld [vmem:[%s342 + $0x208] sm:$0xff]
                  %411 = vst [vmem:[%s343 + $0x108] sm:$0xff] %v410
                  %v412 = vld [vmem:[%s342 + $0x210] sm:$0xff]
                  %413 = vst [vmem:[%s343 + $0x110] sm:$0xff] %v412
                  %v414 = vld [vmem:[%s342 + $0x218] sm:$0xff]
                  %415 = vst [vmem:[%s343 + $0x118] sm:$0xff] %v414
                  %v416 = vld [vmem:[%s342 + $0x220] sm:$0xff]
                  %417 = vst [vmem:[%s343 + $0x120] sm:$0xff] %v416
                  %v418 = vld [vmem:[%s342 + $0x228] sm:$0xff]
                  %419 = vst [vmem:[%s343 + $0x128] sm:$0xff] %v418
                  %v420 = vld [vmem:[%s342 + $0x230] sm:$0xff]
                  %421 = vst [vmem:[%s343 + $0x130] sm:$0xff] %v420
                  %v422 = vld [vmem:[%s342 + $0x238] sm:$0xff]
                  %423 = vst [vmem:[%s343 + $0x138] sm:$0xff] %v422
                  %v424 = vld [vmem:[%s342 + $0x240] sm:$0xff]
                  %425 = vst [vmem:[%s343 + $0x140] sm:$0xff] %v424
                  %v426 = vld [vmem:[%s342 + $0x248] sm:$0xff]
                  %427 = vst [vmem:[%s343 + $0x148] sm:$0xff] %v426
                  %v428 = vld [vmem:[%s342 + $0x250] sm:$0xff]
                  %429 = vst [vmem:[%s343 + $0x150] sm:$0xff] %v428
                  %v430 = vld [vmem:[%s342 + $0x258] sm:$0xff]
                  %431 = vst [vmem:[%s343 + $0x158] sm:$0xff] %v430
                  %v432 = vld [vmem:[%s342 + $0x260] sm:$0xff]
                  %433 = vst [vmem:[%s343 + $0x160] sm:$0xff] %v432
                  %v434 = vld [vmem:[%s342 + $0x268] sm:$0xff]
                  %435 = vst [vmem:[%s343 + $0x168] sm:$0xff] %v434
                  %v436 = vld [vmem:[%s342 + $0x270] sm:$0xff]
                  %437 = vst [vmem:[%s343 + $0x170] sm:$0xff] %v436
                  %v438 = vld [vmem:[%s342 + $0x278] sm:$0xff]
                  %439 = vst [vmem:[%s343 + $0x178] sm:$0xff] %v438
                  %v440 = vld [vmem:[%s342 + $0x300] sm:$0xff]
                  %441 = vst [vmem:[%s343 + $0x180] sm:$0xff] %v440
                  %v442 = vld [vmem:[%s342 + $0x308] sm:$0xff]
                  %443 = vst [vmem:[%s343 + $0x188] sm:$0xff] %v442
                  %v444 = vld [vmem:[%s342 + $0x310] sm:$0xff]
                  %445 = vst [vmem:[%s343 + $0x190] sm:$0xff] %v444
                  %v446 = vld [vmem:[%s342 + $0x318] sm:$0xff]
                  %447 = vst [vmem:[%s343 + $0x198] sm:$0xff] %v446
                  %v448 = vld [vmem:[%s342 + $0x320] sm:$0xff]
                  %449 = vst [vmem:[%s343 + $0x1a0] sm:$0xff] %v448
                  %v450 = vld [vmem:[%s342 + $0x328] sm:$0xff]
                  %451 = vst [vmem:[%s343 + $0x1a8] sm:$0xff] %v450
                  %v452 = vld [vmem:[%s342 + $0x330] sm:$0xff]
                  %453 = vst [vmem:[%s343 + $0x1b0] sm:$0xff] %v452
                  %v454 = vld [vmem:[%s342 + $0x338] sm:$0xff]
                  %455 = vst [vmem:[%s343 + $0x1b8] sm:$0xff] %v454
                  %v456 = vld [vmem:[%s342 + $0x340] sm:$0xff]
                  %457 = vst [vmem:[%s343 + $0x1c0] sm:$0xff] %v456
                  %v458 = vld [vmem:[%s342 + $0x348] sm:$0xff]
                  %459 = vst [vmem:[%s343 + $0x1c8] sm:$0xff] %v458
                  %v460 = vld [vmem:[%s342 + $0x350] sm:$0xff]
                  %461 = vst [vmem:[%s343 + $0x1d0] sm:$0xff] %v460
                  %v462 = vld [vmem:[%s342 + $0x358] sm:$0xff]
                  %463 = vst [vmem:[%s343 + $0x1d8] sm:$0xff] %v462
                  %v464 = vld [vmem:[%s342 + $0x360] sm:$0xff]
                  %465 = vst [vmem:[%s343 + $0x1e0] sm:$0xff] %v464
                  %v466 = vld [vmem:[%s342 + $0x368] sm:$0xff]
                  %467 = vst [vmem:[%s343 + $0x1e8] sm:$0xff] %v466
                  %v468 = vld [vmem:[%s342 + $0x370] sm:$0xff]
                  %469 = vst [vmem:[%s343 + $0x1f0] sm:$0xff] %v468
                  %v470 = vld [vmem:[%s342 + $0x378] sm:$0xff]
                  %471 = vst [vmem:[%s343 + $0x1f8] sm:$0xff] %v470
                $region52: #{tpu_custom_call.1} parent=46 // loop_footer
                  %s341 = sadd.s32 1, %s337
                $region53: #{tpu_custom_call.1} parent=46 // loop_footer_branch
                  %336 = sbr.rel target = $region49
                $region54: #{tpu_custom_call.1} parent=46 // loop_exit
                  _
              $region47: #{tpu_custom_call.1} parent=31 // pred_fallthru
                _
              // Predicated region
              $region55: #{tpu_custom_call.1} parent=31 // pred_check
                _
              $region56: #{tpu_custom_call.1} parent=31 // pred_check_branch
                %473 = sbr.rel target = $region58
              $region57: #{tpu_custom_call.1} parent=31 // pred_region
                _
              $region58: #{tpu_custom_call.1} parent=31 // pred_fallthru
                _
            $region32: #{tpu_custom_call.1} parent=27 // pred_fallthru
              _
            // Predicated region
            $region33: #{tpu_custom_call.1} parent=27 // pred_check
              _
            $region34: #{tpu_custom_call.1} parent=27 // pred_check_branch
              %196 = sbr.rel target = $region36
            $region35: #{tpu_custom_call.1} parent=27 // pred_region
              loop: start=0, step=1, limit=1
              $region37: #{tpu_custom_call.1} parent=35 // loop_pre_header
                _
              $region38: #{tpu_custom_call.1} parent=35 // loop_header
                %s199 = sphi 0, %s203
                %p200 = scmp.ge.s32.totalorder %s199, 1
                %s204 = sphi %s190, %s190
                %s205 = sphi %s184, %s184
              $region39: #{tpu_custom_call.1} parent=35 // loop_header_branch
                %202 = sbr.rel (%p200) target = $region43
              $region40: #{tpu_custom_call.1} parent=35 // loop_body
                %v206 = vld [vmem:[%s204] sm:$0xff]
                %207 = vst [vmem:[%s205] sm:$0xff] %v206
                %v208 = vld [vmem:[%s204 + $0x8] sm:$0xff]
                %209 = vst [vmem:[%s205 + $0x8] sm:$0xff] %v208
                %v210 = vld [vmem:[%s204 + $0x10] sm:$0xff]
                %211 = vst [vmem:[%s205 + $0x10] sm:$0xff] %v210
                %v212 = vld [vmem:[%s204 + $0x18] sm:$0xff]
                %213 = vst [vmem:[%s205 + $0x18] sm:$0xff] %v212
                %v214 = vld [vmem:[%s204 + $0x20] sm:$0xff]
                %215 = vst [vmem:[%s205 + $0x20] sm:$0xff] %v214
                %v216 = vld [vmem:[%s204 + $0x28] sm:$0xff]
                %217 = vst [vmem:[%s205 + $0x28] sm:$0xff] %v216
                %v218 = vld [vmem:[%s204 + $0x30] sm:$0xff]
                %219 = vst [vmem:[%s205 + $0x30] sm:$0xff] %v218
                %v220 = vld [vmem:[%s204 + $0x38] sm:$0xff]
                %221 = vst [vmem:[%s205 + $0x38] sm:$0xff] %v220
                %v222 = vld [vmem:[%s204 + $0x40] sm:$0xff]
                %223 = vst [vmem:[%s205 + $0x40] sm:$0xff] %v222
                %v224 = vld [vmem:[%s204 + $0x48] sm:$0xff]
                %225 = vst [vmem:[%s205 + $0x48] sm:$0xff] %v224
                %v226 = vld [vmem:[%s204 + $0x50] sm:$0xff]
                %227 = vst [vmem:[%s205 + $0x50] sm:$0xff] %v226
                %v228 = vld [vmem:[%s204 + $0x58] sm:$0xff]
                %229 = vst [vmem:[%s205 + $0x58] sm:$0xff] %v228
                %v230 = vld [vmem:[%s204 + $0x60] sm:$0xff]
                %231 = vst [vmem:[%s205 + $0x60] sm:$0xff] %v230
                %v232 = vld [vmem:[%s204 + $0x68] sm:$0xff]
                %233 = vst [vmem:[%s205 + $0x68] sm:$0xff] %v232
                %v234 = vld [vmem:[%s204 + $0x70] sm:$0xff]
                %235 = vst [vmem:[%s205 + $0x70] sm:$0xff] %v234
                %v236 = vld [vmem:[%s204 + $0x78] sm:$0xff]
                %237 = vst [vmem:[%s205 + $0x78] sm:$0xff] %v236
                %v238 = vld [vmem:[%s204 + $0x100] sm:$0xff]
                %239 = vst [vmem:[%s205 + $0x80] sm:$0xff] %v238
                %v240 = vld [vmem:[%s204 + $0x108] sm:$0xff]
                %241 = vst [vmem:[%s205 + $0x88] sm:$0xff] %v240
                %v242 = vld [vmem:[%s204 + $0x110] sm:$0xff]
                %243 = vst [vmem:[%s205 + $0x90] sm:$0xff] %v242
                %v244 = vld [vmem:[%s204 + $0x118] sm:$0xff]
                %245 = vst [vmem:[%s205 + $0x98] sm:$0xff] %v244
                %v246 = vld [vmem:[%s204 + $0x120] sm:$0xff]
                %247 = vst [vmem:[%s205 + $0xa0] sm:$0xff] %v246
                %v248 = vld [vmem:[%s204 + $0x128] sm:$0xff]
                %249 = vst [vmem:[%s205 + $0xa8] sm:$0xff] %v248
                %v250 = vld [vmem:[%s204 + $0x130] sm:$0xff]
                %251 = vst [vmem:[%s205 + $0xb0] sm:$0xff] %v250
                %v252 = vld [vmem:[%s204 + $0x138] sm:$0xff]
                %253 = vst [vmem:[%s205 + $0xb8] sm:$0xff] %v252
                %v254 = vld [vmem:[%s204 + $0x140] sm:$0xff]
                %255 = vst [vmem:[%s205 + $0xc0] sm:$0xff] %v254
                %v256 = vld [vmem:[%s204 + $0x148] sm:$0xff]
                %257 = vst [vmem:[%s205 + $0xc8] sm:$0xff] %v256
                %v258 = vld [vmem:[%s204 + $0x150] sm:$0xff]
                %259 = vst [vmem:[%s205 + $0xd0] sm:$0xff] %v258
                %v260 = vld [vmem:[%s204 + $0x158] sm:$0xff]
                %261 = vst [vmem:[%s205 + $0xd8] sm:$0xff] %v260
                %v262 = vld [vmem:[%s204 + $0x160] sm:$0xff]
                %263 = vst [vmem:[%s205 + $0xe0] sm:$0xff] %v262
                %v264 = vld [vmem:[%s204 + $0x168] sm:$0xff]
                %265 = vst [vmem:[%s205 + $0xe8] sm:$0xff] %v264
                %v266 = vld [vmem:[%s204 + $0x170] sm:$0xff]
                %267 = vst [vmem:[%s205 + $0xf0] sm:$0xff] %v266
                %v268 = vld [vmem:[%s204 + $0x178] sm:$0xff]
                %269 = vst [vmem:[%s205 + $0xf8] sm:$0xff] %v268
                %v270 = vld [vmem:[%s204 + $0x200] sm:$0xff]
                %271 = vst [vmem:[%s205 + $0x100] sm:$0xff] %v270
                %v272 = vld [vmem:[%s204 + $0x208] sm:$0xff]
                %273 = vst [vmem:[%s205 + $0x108] sm:$0xff] %v272
                %v274 = vld [vmem:[%s204 + $0x210] sm:$0xff]
                %275 = vst [vmem:[%s205 + $0x110] sm:$0xff] %v274
                %v276 = vld [vmem:[%s204 + $0x218] sm:$0xff]
                %277 = vst [vmem:[%s205 + $0x118] sm:$0xff] %v276
                %v278 = vld [vmem:[%s204 + $0x220] sm:$0xff]
                %279 = vst [vmem:[%s205 + $0x120] sm:$0xff] %v278
                %v280 = vld [vmem:[%s204 + $0x228] sm:$0xff]
                %281 = vst [vmem:[%s205 + $0x128] sm:$0xff] %v280
                %v282 = vld [vmem:[%s204 + $0x230] sm:$0xff]
                %283 = vst [vmem:[%s205 + $0x130] sm:$0xff] %v282
                %v284 = vld [vmem:[%s204 + $0x238] sm:$0xff]
                %285 = vst [vmem:[%s205 + $0x138] sm:$0xff] %v284
                %v286 = vld [vmem:[%s204 + $0x240] sm:$0xff]
                %287 = vst [vmem:[%s205 + $0x140] sm:$0xff] %v286
                %v288 = vld [vmem:[%s204 + $0x248] sm:$0xff]
                %289 = vst [vmem:[%s205 + $0x148] sm:$0xff] %v288
                %v290 = vld [vmem:[%s204 + $0x250] sm:$0xff]
                %291 = vst [vmem:[%s205 + $0x150] sm:$0xff] %v290
                %v292 = vld [vmem:[%s204 + $0x258] sm:$0xff]
                %293 = vst [vmem:[%s205 + $0x158] sm:$0xff] %v292
                %v294 = vld [vmem:[%s204 + $0x260] sm:$0xff]
                %295 = vst [vmem:[%s205 + $0x160] sm:$0xff] %v294
                %v296 = vld [vmem:[%s204 + $0x268] sm:$0xff]
                %297 = vst [vmem:[%s205 + $0x168] sm:$0xff] %v296
                %v298 = vld [vmem:[%s204 + $0x270] sm:$0xff]
                %299 = vst [vmem:[%s205 + $0x170] sm:$0xff] %v298
                %v300 = vld [vmem:[%s204 + $0x278] sm:$0xff]
                %301 = vst [vmem:[%s205 + $0x178] sm:$0xff] %v300
                %v302 = vld [vmem:[%s204 + $0x300] sm:$0xff]
                %303 = vst [vmem:[%s205 + $0x180] sm:$0xff] %v302
                %v304 = vld [vmem:[%s204 + $0x308] sm:$0xff]
                %305 = vst [vmem:[%s205 + $0x188] sm:$0xff] %v304
                %v306 = vld [vmem:[%s204 + $0x310] sm:$0xff]
                %307 = vst [vmem:[%s205 + $0x190] sm:$0xff] %v306
                %v308 = vld [vmem:[%s204 + $0x318] sm:$0xff]
                %309 = vst [vmem:[%s205 + $0x198] sm:$0xff] %v308
                %v310 = vld [vmem:[%s204 + $0x320] sm:$0xff]
                %311 = vst [vmem:[%s205 + $0x1a0] sm:$0xff] %v310
                %v312 = vld [vmem:[%s204 + $0x328] sm:$0xff]
                %313 = vst [vmem:[%s205 + $0x1a8] sm:$0xff] %v312
                %v314 = vld [vmem:[%s204 + $0x330] sm:$0xff]
                %315 = vst [vmem:[%s205 + $0x1b0] sm:$0xff] %v314
                %v316 = vld [vmem:[%s204 + $0x338] sm:$0xff]
                %317 = vst [vmem:[%s205 + $0x1b8] sm:$0xff] %v316
                %v318 = vld [vmem:[%s204 + $0x340] sm:$0xff]
                %319 = vst [vmem:[%s205 + $0x1c0] sm:$0xff] %v318
                %v320 = vld [vmem:[%s204 + $0x348] sm:$0xff]
                %321 = vst [vmem:[%s205 + $0x1c8] sm:$0xff] %v320
                %v322 = vld [vmem:[%s204 + $0x350] sm:$0xff]
                %323 = vst [vmem:[%s205 + $0x1d0] sm:$0xff] %v322
                %v324 = vld [vmem:[%s204 + $0x358] sm:$0xff]
                %325 = vst [vmem:[%s205 + $0x1d8] sm:$0xff] %v324
                %v326 = vld [vmem:[%s204 + $0x360] sm:$0xff]
                %327 = vst [vmem:[%s205 + $0x1e0] sm:$0xff] %v326
                %v328 = vld [vmem:[%s204 + $0x368] sm:$0xff]
                %329 = vst [vmem:[%s205 + $0x1e8] sm:$0xff] %v328
                %v330 = vld [vmem:[%s204 + $0x370] sm:$0xff]
                %331 = vst [vmem:[%s205 + $0x1f0] sm:$0xff] %v330
                %v332 = vld [vmem:[%s204 + $0x378] sm:$0xff]
                %333 = vst [vmem:[%s205 + $0x1f8] sm:$0xff] %v332
              $region41: #{tpu_custom_call.1} parent=35 // loop_footer
                %s203 = sadd.s32 1, %s199
              $region42: #{tpu_custom_call.1} parent=35 // loop_footer_branch
                %198 = sbr.rel target = $region38
              $region43: #{tpu_custom_call.1} parent=35 // loop_exit
                _
            $region36: #{tpu_custom_call.1} parent=27 // pred_fallthru
              _
          $region28: #{tpu_custom_call.1} parent=23 // pred_fallthru
            _
          %474 = vnop
        $region24: #{tpu_custom_call.1} parent=19 // pred_fallthru
          _
        // Predicated region
        $region59: #{tpu_custom_call.1} parent=19 // pred_check
          %p475 = pneg %p75
        $region60: #{tpu_custom_call.1} parent=19 // pred_check_branch
          %477 = sbr.rel (%p475) target = $region62
        $region61: #{tpu_custom_call.1} parent=19 // pred_region
          %s478 = smul.u32 16, %s23
          %p479 = scmp.lt.s32.totalorder %s478, 31
          %s480 = scalar_select %p479, %s478, 31
          %s481 = smul.addr %s480, 8
          %s482 = scalar_lea.vmem %s1, %s481
          %s483 = smul.u32 16, %s23
        $region62: #{tpu_custom_call.1} parent=19 // pred_fallthru
          _
      $region20: #{tpu_custom_call.1} parent=5 // pred_fallthru
        _
      %p484 = scmp.le.s32.totalorder 1, %s15
      %p485 = scmp.lt.s32.totalorder %s15, 3
      %p486 = pnand %p484, %p485
      %p487 = pneg %p486
      // Predicated region
      $region63: #{tpu_custom_call.1} parent=5 // pred_check
        _
      $region64: #{tpu_custom_call.1} parent=5 // pred_check_branch
        %489 = sbr.rel (%p486) target = $region66
      $region65: #{tpu_custom_call.1} parent=5 // pred_region
        %s490 = ssub.s32 %s15, 1
        %s491 = sand.u32 %s42, 1
        %s492 = sand.u32 %s42, 1
        %s493 = smul.addr %s492, 512
        %s494 = scalar_lea.vmem [#allocation3], %s493
        // Predicated region
        $region67: #{tpu_custom_call.1} parent=65 // pred_check
          %p495 = pneg %p55
        $region68: #{tpu_custom_call.1} parent=65 // pred_check_branch
          %497 = sbr.rel (%p495) target = $region70
        $region69: #{tpu_custom_call.1} parent=65 // pred_region
          _
        $region70: #{tpu_custom_call.1} parent=65 // pred_fallthru
          _
        %s498 = sand.u32 %s42, 1
        %s499 = sand.u32 %s42, 1
        %s500 = smul.addr %s499, 512
        %s501 = scalar_lea.vmem [#allocation3], %s500
        %p502 = pneg %p55
        %p503 = pneg %p52
        %s504 = smul.u32 16, %s25
        %p505 = scmp.lt.s32.totalorder %s504, 31
        %s506 = scalar_select %p505, %s504, 31
        %s507 = smul.addr %s506, 8
        %s508 = scalar_lea.vmem %s1, %s507
        %p509 = pneg %p81
        %p510 = pneg %p78
        %p511 = pneg %p102
        %p512 = pneg %p99
        %p513 = pneg %p128
        %p514 = pneg %p125
        %p515 = pneg %p156
        %p516 = pneg %p153
        %s517 = sand.u32 %s143, 1
        %s518 = scalar_lea.sflag [#allocation7], %s517
        %s519 = sand.u32 %s143, 1
        %s520 = smul.addr %s519, 4
        %s521 = scalar_lea.vmem [#allocation6], %s520
        %s522 = smul.u32 4, %s24
        %s523 = smul.u32 16, %s25
        %s524 = smul.u32 16, %s25
        %p525 = scmp.lt.s32.totalorder %s524, 31
        %s526 = scalar_select %p525, %s524, 31
        %s527 = smul.addr %s526, 8
        %s528 = scalar_lea.vmem %s1, %s527
        %s529 = smul.u32 16, %s25
        %p530 = scmp.eq.s32.totalorder %s25, 0
        // Predicated region
        $region71: #{tpu_custom_call.1} parent=65 // pred_check
          %p531 = pneg %p530
        $region72: #{tpu_custom_call.1} parent=65 // pred_check_branch
          %533 = sbr.rel (%p531) target = $region74
        $region73: #{tpu_custom_call.1} parent=65 // pred_region
          %534 = vst [vmem:[#allocation2] sm:$0xf] 0.0
        $region74: #{tpu_custom_call.1} parent=65 // pred_fallthru
          _
        %v535 = vld [vmem:[%s494] sm:$0xff]
        %v536 = vld [vmem:[%s494 + $0x8] sm:$0xff]
        %v537 = vld [vmem:[%s494 + $0x10] sm:$0xff]
        %v538 = vld [vmem:[%s494 + $0x18] sm:$0xff]
        %v539 = vld [vmem:[%s494 + $0x20] sm:$0xff]
        %v540 = vld [vmem:[%s494 + $0x28] sm:$0xff]
        %v541 = vld [vmem:[%s494 + $0x30] sm:$0xff]
        %v542 = vld [vmem:[%s494 + $0x38] sm:$0xff]
        %v543 = vld [vmem:[%s494 + $0x40] sm:$0xff]
        %v544 = vld [vmem:[%s494 + $0x48] sm:$0xff]
        %v545 = vld [vmem:[%s494 + $0x50] sm:$0xff]
        %v546 = vld [vmem:[%s494 + $0x58] sm:$0xff]
        %v547 = vld [vmem:[%s494 + $0x60] sm:$0xff]
        %v548 = vld [vmem:[%s494 + $0x68] sm:$0xff]
        %v549 = vld [vmem:[%s494 + $0x70] sm:$0xff]
        %v550 = vld [vmem:[%s494 + $0x78] sm:$0xff]
        %v551 = vld [vmem:[%s494 + $0x80] sm:$0xff]
        %v552 = vld [vmem:[%s494 + $0x88] sm:$0xff]
        %v553 = vld [vmem:[%s494 + $0x90] sm:$0xff]
        %v554 = vld [vmem:[%s494 + $0x98] sm:$0xff]
        %v555 = vld [vmem:[%s494 + $0xa0] sm:$0xff]
        %v556 = vld [vmem:[%s494 + $0xa8] sm:$0xff]
        %v557 = vld [vmem:[%s494 + $0xb0] sm:$0xff]
        %v558 = vld [vmem:[%s494 + $0xb8] sm:$0xff]
        %v559 = vld [vmem:[%s494 + $0xc0] sm:$0xff]
        %v560 = vld [vmem:[%s494 + $0xc8] sm:$0xff]
        %v561 = vld [vmem:[%s494 + $0xd0] sm:$0xff]
        %v562 = vld [vmem:[%s494 + $0xd8] sm:$0xff]
        %v563 = vld [vmem:[%s494 + $0xe0] sm:$0xff]
        %v564 = vld [vmem:[%s494 + $0xe8] sm:$0xff]
        %v565 = vld [vmem:[%s494 + $0xf0] sm:$0xff]
        %v566 = vld [vmem:[%s494 + $0xf8] sm:$0xff]
        %v567 = vld [vmem:[%s494 + $0x100] sm:$0xff]
        %v568 = vld [vmem:[%s494 + $0x108] sm:$0xff]
        %v569 = vld [vmem:[%s494 + $0x110] sm:$0xff]
        %v570 = vld [vmem:[%s494 + $0x118] sm:$0xff]
        %v571 = vld [vmem:[%s494 + $0x120] sm:$0xff]
        %v572 = vld [vmem:[%s494 + $0x128] sm:$0xff]
        %v573 = vld [vmem:[%s494 + $0x130] sm:$0xff]
        %v574 = vld [vmem:[%s494 + $0x138] sm:$0xff]
        %v575 = vld [vmem:[%s494 + $0x140] sm:$0xff]
        %v576 = vld [vmem:[%s494 + $0x148] sm:$0xff]
        %v577 = vld [vmem:[%s494 + $0x150] sm:$0xff]
        %v578 = vld [vmem:[%s494 + $0x158] sm:$0xff]
        %v579 = vld [vmem:[%s494 + $0x160] sm:$0xff]
        %v580 = vld [vmem:[%s494 + $0x168] sm:$0xff]
        %v581 = vld [vmem:[%s494 + $0x170] sm:$0xff]
        %v582 = vld [vmem:[%s494 + $0x178] sm:$0xff]
        %v583 = vld [vmem:[%s494 + $0x180] sm:$0xff]
        %v584 = vld [vmem:[%s494 + $0x188] sm:$0xff]
        %v585 = vld [vmem:[%s494 + $0x190] sm:$0xff]
        %v586 = vld [vmem:[%s494 + $0x198] sm:$0xff]
        %v587 = vld [vmem:[%s494 + $0x1a0] sm:$0xff]
        %v588 = vld [vmem:[%s494 + $0x1a8] sm:$0xff]
        %v589 = vld [vmem:[%s494 + $0x1b0] sm:$0xff]
        %v590 = vld [vmem:[%s494 + $0x1b8] sm:$0xff]
        %v591 = vld [vmem:[%s494 + $0x1c0] sm:$0xff]
        %v592 = vld [vmem:[%s494 + $0x1c8] sm:$0xff]
        %v593 = vld [vmem:[%s494 + $0x1d0] sm:$0xff]
        %v594 = vld [vmem:[%s494 + $0x1d8] sm:$0xff]
        %v595 = vld [vmem:[%s494 + $0x1e0] sm:$0xff]
        %v596 = vld [vmem:[%s494 + $0x1e8] sm:$0xff]
        %v597 = vld [vmem:[%s494 + $0x1f0] sm:$0xff]
        %v598 = vld [vmem:[%s494 + $0x1f8] sm:$0xff]
        %vm599 = vcmask 523264
        %v600 = vsel %vm599, %v535, 0.0
        %601 = vadd.xlane.f32.xlu0 %v600
        %v602 = vpop.xlane.xlu0 %601
        %v603 = vsel %vm599, %v536, 0.0
        %604 = vadd.xlane.f32.xlu0 %v603
        %v605 = vpop.xlane.xlu0 %604
        %v606 = vsel %vm599, %v537, 0.0
        %607 = vadd.xlane.f32.xlu0 %v606
        %v608 = vpop.xlane.xlu0 %607
        %v609 = vsel %vm599, %v538, 0.0
        %610 = vadd.xlane.f32.xlu0 %v609
        %v611 = vpop.xlane.xlu0 %610
        %v612 = vsel %vm599, %v539, 0.0
        %613 = vadd.xlane.f32.xlu0 %v612
        %v614 = vpop.xlane.xlu0 %613
        %v615 = vsel %vm599, %v540, 0.0
        %616 = vadd.xlane.f32.xlu0 %v615
        %v617 = vpop.xlane.xlu0 %616
        %v618 = vsel %vm599, %v541, 0.0
        %619 = vadd.xlane.f32.xlu0 %v618
        %v620 = vpop.xlane.xlu0 %619
        %v621 = vsel %vm599, %v542, 0.0
        %622 = vadd.xlane.f32.xlu0 %v621
        %v623 = vpop.xlane.xlu0 %622
        %v624 = vsel %vm599, %v543, 0.0
        %625 = vadd.xlane.f32.xlu0 %v624
        %v626 = vpop.xlane.xlu0 %625
        %v627 = vsel %vm599, %v544, 0.0
        %628 = vadd.xlane.f32.xlu0 %v627
        %v629 = vpop.xlane.xlu0 %628
        %v630 = vsel %vm599, %v545, 0.0
        %631 = vadd.xlane.f32.xlu0 %v630
        %v632 = vpop.xlane.xlu0 %631
        %v633 = vsel %vm599, %v546, 0.0
        %634 = vadd.xlane.f32.xlu0 %v633
        %v635 = vpop.xlane.xlu0 %634
        %v636 = vsel %vm599, %v547, 0.0
        %637 = vadd.xlane.f32.xlu0 %v636
        %v638 = vpop.xlane.xlu0 %637
        %v639 = vsel %vm599, %v548, 0.0
        %640 = vadd.xlane.f32.xlu0 %v639
        %v641 = vpop.xlane.xlu0 %640
        %v642 = vsel %vm599, %v549, 0.0
        %643 = vadd.xlane.f32.xlu0 %v642
        %v644 = vpop.xlane.xlu0 %643
        %v645 = vsel %vm599, %v550, 0.0
        %646 = vadd.xlane.f32.xlu0 %v645
        %v647 = vpop.xlane.xlu0 %646
        %v648 = vsel %vm599, %v551, 0.0
        %649 = vadd.xlane.f32.xlu0 %v648
        %v650 = vpop.xlane.xlu0 %649
        %v651 = vsel %vm599, %v552, 0.0
        %652 = vadd.xlane.f32.xlu0 %v651
        %v653 = vpop.xlane.xlu0 %652
        %v654 = vsel %vm599, %v553, 0.0
        %655 = vadd.xlane.f32.xlu0 %v654
        %v656 = vpop.xlane.xlu0 %655
        %v657 = vsel %vm599, %v554, 0.0
        %658 = vadd.xlane.f32.xlu0 %v657
        %v659 = vpop.xlane.xlu0 %658
        %v660 = vsel %vm599, %v555, 0.0
        %661 = vadd.xlane.f32.xlu0 %v660
        %v662 = vpop.xlane.xlu0 %661
        %v663 = vsel %vm599, %v556, 0.0
        %664 = vadd.xlane.f32.xlu0 %v663
        %v665 = vpop.xlane.xlu0 %664
        %v666 = vsel %vm599, %v557, 0.0
        %667 = vadd.xlane.f32.xlu0 %v666
        %v668 = vpop.xlane.xlu0 %667
        %v669 = vsel %vm599, %v558, 0.0
        %670 = vadd.xlane.f32.xlu0 %v669
        %v671 = vpop.xlane.xlu0 %670
        %v672 = vsel %vm599, %v559, 0.0
        %673 = vadd.xlane.f32.xlu0 %v672
        %v674 = vpop.xlane.xlu0 %673
        %v675 = vsel %vm599, %v560, 0.0
        %676 = vadd.xlane.f32.xlu0 %v675
        %v677 = vpop.xlane.xlu0 %676
        %v678 = vsel %vm599, %v561, 0.0
        %679 = vadd.xlane.f32.xlu0 %v678
        %v680 = vpop.xlane.xlu0 %679
        %v681 = vsel %vm599, %v562, 0.0
        %682 = vadd.xlane.f32.xlu0 %v681
        %v683 = vpop.xlane.xlu0 %682
        %v684 = vsel %vm599, %v563, 0.0
        %685 = vadd.xlane.f32.xlu0 %v684
        %v686 = vpop.xlane.xlu0 %685
        %v687 = vsel %vm599, %v564, 0.0
        %688 = vadd.xlane.f32.xlu0 %v687
        %v689 = vpop.xlane.xlu0 %688
        %v690 = vsel %vm599, %v565, 0.0
        %691 = vadd.xlane.f32.xlu0 %v690
        %v692 = vpop.xlane.xlu0 %691
        %v693 = vsel %vm599, %v566, 0.0
        %694 = vadd.xlane.f32.xlu0 %v693
        %v695 = vpop.xlane.xlu0 %694
        %v696 = vsel %vm599, %v567, 0.0
        %697 = vadd.xlane.f32.xlu0 %v696
        %v698 = vpop.xlane.xlu0 %697
        %v699 = vsel %vm599, %v568, 0.0
        %700 = vadd.xlane.f32.xlu0 %v699
        %v701 = vpop.xlane.xlu0 %700
        %v702 = vsel %vm599, %v569, 0.0
        %703 = vadd.xlane.f32.xlu0 %v702
        %v704 = vpop.xlane.xlu0 %703
        %v705 = vsel %vm599, %v570, 0.0
        %706 = vadd.xlane.f32.xlu0 %v705
        %v707 = vpop.xlane.xlu0 %706
        %v708 = vsel %vm599, %v571, 0.0
        %709 = vadd.xlane.f32.xlu0 %v708
        %v710 = vpop.xlane.xlu0 %709
        %v711 = vsel %vm599, %v572, 0.0
        %712 = vadd.xlane.f32.xlu0 %v711
        %v713 = vpop.xlane.xlu0 %712
        %v714 = vsel %vm599, %v573, 0.0
        %715 = vadd.xlane.f32.xlu0 %v714
        %v716 = vpop.xlane.xlu0 %715
        %v717 = vsel %vm599, %v574, 0.0
        %718 = vadd.xlane.f32.xlu0 %v717
        %v719 = vpop.xlane.xlu0 %718
        %v720 = vsel %vm599, %v575, 0.0
        %721 = vadd.xlane.f32.xlu0 %v720
        %v722 = vpop.xlane.xlu0 %721
        %v723 = vsel %vm599, %v576, 0.0
        %724 = vadd.xlane.f32.xlu0 %v723
        %v725 = vpop.xlane.xlu0 %724
        %v726 = vsel %vm599, %v577, 0.0
        %727 = vadd.xlane.f32.xlu0 %v726
        %v728 = vpop.xlane.xlu0 %727
        %v729 = vsel %vm599, %v578, 0.0
        %730 = vadd.xlane.f32.xlu0 %v729
        %v731 = vpop.xlane.xlu0 %730
        %v732 = vsel %vm599, %v579, 0.0
        %733 = vadd.xlane.f32.xlu0 %v732
        %v734 = vpop.xlane.xlu0 %733
        %v735 = vsel %vm599, %v580, 0.0
        %736 = vadd.xlane.f32.xlu0 %v735
        %v737 = vpop.xlane.xlu0 %736
        %v738 = vsel %vm599, %v581, 0.0
        %739 = vadd.xlane.f32.xlu0 %v738
        %v740 = vpop.xlane.xlu0 %739
        %v741 = vsel %vm599, %v582, 0.0
        %742 = vadd.xlane.f32.xlu0 %v741
        %v743 = vpop.xlane.xlu0 %742
        %v744 = vsel %vm599, %v583, 0.0
        %745 = vadd.xlane.f32.xlu0 %v744
        %v746 = vpop.xlane.xlu0 %745
        %v747 = vsel %vm599, %v584, 0.0
        %748 = vadd.xlane.f32.xlu0 %v747
        %v749 = vpop.xlane.xlu0 %748
        %v750 = vsel %vm599, %v585, 0.0
        %751 = vadd.xlane.f32.xlu0 %v750
        %v752 = vpop.xlane.xlu0 %751
        %v753 = vsel %vm599, %v586, 0.0
        %754 = vadd.xlane.f32.xlu0 %v753
        %v755 = vpop.xlane.xlu0 %754
        %v756 = vsel %vm599, %v587, 0.0
        %757 = vadd.xlane.f32.xlu0 %v756
        %v758 = vpop.xlane.xlu0 %757
        %v759 = vsel %vm599, %v588, 0.0
        %760 = vadd.xlane.f32.xlu0 %v759
        %v761 = vpop.xlane.xlu0 %760
        %v762 = vsel %vm599, %v589, 0.0
        %763 = vadd.xlane.f32.xlu0 %v762
        %v764 = vpop.xlane.xlu0 %763
        %v765 = vsel %vm599, %v590, 0.0
        %766 = vadd.xlane.f32.xlu0 %v765
        %v767 = vpop.xlane.xlu0 %766
        %v768 = vsel %vm599, %v591, 0.0
        %769 = vadd.xlane.f32.xlu0 %v768
        %v770 = vpop.xlane.xlu0 %769
        %v771 = vsel %vm599, %v592, 0.0
        %772 = vadd.xlane.f32.xlu0 %v771
        %v773 = vpop.xlane.xlu0 %772
        %v774 = vsel %vm599, %v593, 0.0
        %775 = vadd.xlane.f32.xlu0 %v774
        %v776 = vpop.xlane.xlu0 %775
        %v777 = vsel %vm599, %v594, 0.0
        %778 = vadd.xlane.f32.xlu0 %v777
        %v779 = vpop.xlane.xlu0 %778
        %v780 = vsel %vm599, %v595, 0.0
        %781 = vadd.xlane.f32.xlu0 %v780
        %v782 = vpop.xlane.xlu0 %781
        %v783 = vsel %vm599, %v596, 0.0
        %784 = vadd.xlane.f32.xlu0 %v783
        %v785 = vpop.xlane.xlu0 %784
        %v786 = vsel %vm599, %v597, 0.0
        %787 = vadd.xlane.f32.xlu0 %v786
        %v788 = vpop.xlane.xlu0 %787
        %v789 = vsel %vm599, %v598, 0.0
        %790 = vadd.xlane.f32.xlu0 %v789
        %v791 = vpop.xlane.xlu0 %790
        %v792 = vmul.f32 %v602, 0.015625
        %v793 = vmul.f32 %v605, 0.015625
        %v794 = vmul.f32 %v608, 0.015625
        %v795 = vmul.f32 %v611, 0.015625
        %v796 = vmul.f32 %v614, 0.015625
        %v797 = vmul.f32 %v617, 0.015625
        %v798 = vmul.f32 %v620, 0.015625
        %v799 = vmul.f32 %v623, 0.015625
        %v800 = vmul.f32 %v626, 0.015625
        %v801 = vmul.f32 %v629, 0.015625
        %v802 = vmul.f32 %v632, 0.015625
        %v803 = vmul.f32 %v635, 0.015625
        %v804 = vmul.f32 %v638, 0.015625
        %v805 = vmul.f32 %v641, 0.015625
        %v806 = vmul.f32 %v644, 0.015625
        %v807 = vmul.f32 %v647, 0.015625
        %v808 = vmul.f32 %v650, 0.015625
        %v809 = vmul.f32 %v653, 0.015625
        %v810 = vmul.f32 %v656, 0.015625
        %v811 = vmul.f32 %v659, 0.015625
        %v812 = vmul.f32 %v662, 0.015625
        %v813 = vmul.f32 %v665, 0.015625
        %v814 = vmul.f32 %v668, 0.015625
        %v815 = vmul.f32 %v671, 0.015625
        %v816 = vmul.f32 %v674, 0.015625
        %v817 = vmul.f32 %v677, 0.015625
        %v818 = vmul.f32 %v680, 0.015625
        %v819 = vmul.f32 %v683, 0.015625
        %v820 = vmul.f32 %v686, 0.015625
        %v821 = vmul.f32 %v689, 0.015625
        %v822 = vmul.f32 %v692, 0.015625
        %v823 = vmul.f32 %v695, 0.015625
        %v824 = vmul.f32 %v698, 0.015625
        %v825 = vmul.f32 %v701, 0.015625
        %v826 = vmul.f32 %v704, 0.015625
        %v827 = vmul.f32 %v707, 0.015625
        %v828 = vmul.f32 %v710, 0.015625
        %v829 = vmul.f32 %v713, 0.015625
        %v830 = vmul.f32 %v716, 0.015625
        %v831 = vmul.f32 %v719, 0.015625
        %v832 = vmul.f32 %v722, 0.015625
        %v833 = vmul.f32 %v725, 0.015625
        %v834 = vmul.f32 %v728, 0.015625
        %v835 = vmul.f32 %v731, 0.015625
        %v836 = vmul.f32 %v734, 0.015625
        %v837 = vmul.f32 %v737, 0.015625
        %v838 = vmul.f32 %v740, 0.015625
        %v839 = vmul.f32 %v743, 0.015625
        %v840 = vmul.f32 %v746, 0.015625
        %v841 = vmul.f32 %v749, 0.015625
        %v842 = vmul.f32 %v752, 0.015625
        %v843 = vmul.f32 %v755, 0.015625
        %v844 = vmul.f32 %v758, 0.015625
        %v845 = vmul.f32 %v761, 0.015625
        %v846 = vmul.f32 %v764, 0.015625
        %v847 = vmul.f32 %v767, 0.015625
        %v848 = vmul.f32 %v770, 0.015625
        %v849 = vmul.f32 %v773, 0.015625
        %v850 = vmul.f32 %v776, 0.015625
        %v851 = vmul.f32 %v779, 0.015625
        %v852 = vmul.f32 %v782, 0.015625
        %v853 = vmul.f32 %v785, 0.015625
        %v854 = vmul.f32 %v788, 0.015625
        %v855 = vmul.f32 %v791, 0.015625
        %v920 = vlaneseq
        %v921 = vand.u32 %v920, 127
        %v922 = vlaneseq
        %v923 = vshrl.u32 %v922, 7
        %v924 = vsub.s32 %v921, %v923
        %v925 = vrot.slane %v792, %v924
        %v926 = vadd.s32 %v921, 4294967288
        %v927 = vlaneseq
        %v928 = vshrl.u32 %v927, 7
        %v929 = vsub.s32 %v926, %v928
        %v930 = vrot.slane %v793, %v929
        %vm931 = vcmask 130112
        %v932 = vsel %vm931, %v930, %v925
        %v933 = vadd.s32 %v921, 4294967280
        %v934 = vlaneseq
        %v935 = vshrl.u32 %v934, 7
        %v936 = vsub.s32 %v933, %v935
        %v937 = vrot.slane %v794, %v936
        %vm938 = vcmask 195712
        %v939 = vsel %vm938, %v937, %v932
        %v940 = vadd.s32 %v921, 4294967272
        %v941 = vlaneseq
        %v942 = vshrl.u32 %v941, 7
        %v943 = vsub.s32 %v940, %v942
        %v944 = vrot.slane %v795, %v943
        %vm945 = vcmask 261312
        %v946 = vsel %vm945, %v944, %v939
        %v947 = vadd.s32 %v921, 4294967264
        %v948 = vlaneseq
        %v949 = vshrl.u32 %v948, 7
        %v950 = vsub.s32 %v947, %v949
        %v951 = vrot.slane %v796, %v950
        %vm952 = vcmask 326912
        %v953 = vsel %vm952, %v951, %v946
        %v954 = vadd.s32 %v921, 4294967256
        %v955 = vlaneseq
        %v956 = vshrl.u32 %v955, 7
        %v957 = vsub.s32 %v954, %v956
        %v958 = vrot.slane %v797, %v957
        %vm959 = vcmask 392512
        %v960 = vsel %vm959, %v958, %v953
        %v961 = vadd.s32 %v921, 4294967248
        %v962 = vlaneseq
        %v963 = vshrl.u32 %v962, 7
        %v964 = vsub.s32 %v961, %v963
        %v965 = vrot.slane %v798, %v964
        %vm966 = vcmask 458112
        %v967 = vsel %vm966, %v965, %v960
        %v968 = vadd.s32 %v921, 4294967240
        %v969 = vlaneseq
        %v970 = vshrl.u32 %v969, 7
        %v971 = vsub.s32 %v968, %v970
        %v972 = vrot.slane %v799, %v971
        %vm973 = vcmask 523712
        %v974 = vsel %vm973, %v972, %v967
        %v975 = vadd.s32 %v921, 4294967232
        %v976 = vlaneseq
        %v977 = vshrl.u32 %v976, 7
        %v978 = vsub.s32 %v975, %v977
        %v979 = vrot.slane %v800, %v978
        %vm980 = vcmask 589312
        %v981 = vsel %vm980, %v979, %v974
        %v982 = vadd.s32 %v921, 4294967224
        %v983 = vlaneseq
        %v984 = vshrl.u32 %v983, 7
        %v985 = vsub.s32 %v982, %v984
        %v986 = vrot.slane %v801, %v985
        %vm987 = vcmask 654912
        %v988 = vsel %vm987, %v986, %v981
        %v989 = vadd.s32 %v921, 4294967216
        %v990 = vlaneseq
        %v991 = vshrl.u32 %v990, 7
        %v992 = vsub.s32 %v989, %v991
        %v993 = vrot.slane %v802, %v992
        %vm994 = vcmask 720512
        %v995 = vsel %vm994, %v993, %v988
        %v996 = vadd.s32 %v921, 4294967208
        %v997 = vlaneseq
        %v998 = vshrl.u32 %v997, 7
        %v999 = vsub.s32 %v996, %v998
        %v1000 = vrot.slane %v803, %v999
        %vm1001 = vcmask 786112
        %v1002 = vsel %vm1001, %v1000, %v995
        %v1003 = vadd.s32 %v921, 4294967200
        %v1004 = vlaneseq
        %v1005 = vshrl.u32 %v1004, 7
        %v1006 = vsub.s32 %v1003, %v1005
        %v1007 = vrot.slane %v804, %v1006
        %vm1008 = vcmask 851712
        %v1009 = vsel %vm1008, %v1007, %v1002
        %v1010 = vadd.s32 %v921, 4294967192
        %v1011 = vlaneseq
        %v1012 = vshrl.u32 %v1011, 7
        %v1013 = vsub.s32 %v1010, %v1012
        %v1014 = vrot.slane %v805, %v1013
        %vm1015 = vcmask 917312
        %v1016 = vsel %vm1015, %v1014, %v1009
        %v1017 = vadd.s32 %v921, 4294967184
        %v1018 = vlaneseq
        %v1019 = vshrl.u32 %v1018, 7
        %v1020 = vsub.s32 %v1017, %v1019
        %v1021 = vrot.slane %v806, %v1020
        %vm1022 = vcmask 982912
        %v1023 = vsel %vm1022, %v1021, %v1016
        %v1024 = vadd.s32 %v921, 4294967176
        %v1025 = vlaneseq
        %v1026 = vshrl.u32 %v1025, 7
        %v1027 = vsub.s32 %v1024, %v1026
        %v1028 = vrot.slane %v807, %v1027
        %vm1029 = vcmask 1048512
        %v1030 = vsel %vm1029, %v1028, %v1023
        %v1031 = vlaneseq
        %v1032 = vshrl.u32 %v1031, 7
        %v1033 = vsub.s32 %v921, %v1032
        %v1034 = vrot.slane %v808, %v1033
        %v1035 = vlaneseq
        %v1036 = vshrl.u32 %v1035, 7
        %v1037 = vsub.s32 %v926, %v1036
        %v1038 = vrot.slane %v809, %v1037
        %v1039 = vsel %vm931, %v1038, %v1034
        %v1040 = vlaneseq
        %v1041 = vshrl.u32 %v1040, 7
        %v1042 = vsub.s32 %v933, %v1041
        %v1043 = vrot.slane %v810, %v1042
        %v1044 = vsel %vm938, %v1043, %v1039
        %v1045 = vlaneseq
        %v1046 = vshrl.u32 %v1045, 7
        %v1047 = vsub.s32 %v940, %v1046
        %v1048 = vrot.slane %v811, %v1047
        %v1049 = vsel %vm945, %v1048, %v1044
        %v1050 = vlaneseq
        %v1051 = vshrl.u32 %v1050, 7
        %v1052 = vsub.s32 %v947, %v1051
        %v1053 = vrot.slane %v812, %v1052
        %v1054 = vsel %vm952, %v1053, %v1049
        %v1055 = vlaneseq
        %v1056 = vshrl.u32 %v1055, 7
        %v1057 = vsub.s32 %v954, %v1056
        %v1058 = vrot.slane %v813, %v1057
        %v1059 = vsel %vm959, %v1058, %v1054
        %v1060 = vlaneseq
        %v1061 = vshrl.u32 %v1060, 7
        %v1062 = vsub.s32 %v961, %v1061
        %v1063 = vrot.slane %v814, %v1062
        %v1064 = vsel %vm966, %v1063, %v1059
        %v1065 = vlaneseq
        %v1066 = vshrl.u32 %v1065, 7
        %v1067 = vsub.s32 %v968, %v1066
        %v1068 = vrot.slane %v815, %v1067
        %v1069 = vsel %vm973, %v1068, %v1064
        %v1070 = vlaneseq
        %v1071 = vshrl.u32 %v1070, 7
        %v1072 = vsub.s32 %v975, %v1071
        %v1073 = vrot.slane %v816, %v1072
        %v1074 = vsel %vm980, %v1073, %v1069
        %v1075 = vlaneseq
        %v1076 = vshrl.u32 %v1075, 7
        %v1077 = vsub.s32 %v982, %v1076
        %v1078 = vrot.slane %v817, %v1077
        %v1079 = vsel %vm987, %v1078, %v1074
        %v1080 = vlaneseq
        %v1081 = vshrl.u32 %v1080, 7
        %v1082 = vsub.s32 %v989, %v1081
        %v1083 = vrot.slane %v818, %v1082
        %v1084 = vsel %vm994, %v1083, %v1079
        %v1085 = vlaneseq
        %v1086 = vshrl.u32 %v1085, 7
        %v1087 = vsub.s32 %v996, %v1086
        %v1088 = vrot.slane %v819, %v1087
        %v1089 = vsel %vm1001, %v1088, %v1084
        %v1090 = vlaneseq
        %v1091 = vshrl.u32 %v1090, 7
        %v1092 = vsub.s32 %v1003, %v1091
        %v1093 = vrot.slane %v820, %v1092
        %v1094 = vsel %vm1008, %v1093, %v1089
        %v1095 = vlaneseq
        %v1096 = vshrl.u32 %v1095, 7
        %v1097 = vsub.s32 %v1010, %v1096
        %v1098 = vrot.slane %v821, %v1097
        %v1099 = vsel %vm1015, %v1098, %v1094
        %v1100 = vlaneseq
        %v1101 = vshrl.u32 %v1100, 7
        %v1102 = vsub.s32 %v1017, %v1101
        %v1103 = vrot.slane %v822, %v1102
        %v1104 = vsel %vm1022, %v1103, %v1099
        %v1105 = vlaneseq
        %v1106 = vshrl.u32 %v1105, 7
        %v1107 = vsub.s32 %v1024, %v1106
        %v1108 = vrot.slane %v823, %v1107
        %v1109 = vsel %vm1029, %v1108, %v1104
        %v1110 = vlaneseq
        %v1111 = vshrl.u32 %v1110, 7
        %v1112 = vsub.s32 %v921, %v1111
        %v1113 = vrot.slane %v824, %v1112
        %v1114 = vlaneseq
        %v1115 = vshrl.u32 %v1114, 7
        %v1116 = vsub.s32 %v926, %v1115
        %v1117 = vrot.slane %v825, %v1116
        %v1118 = vsel %vm931, %v1117, %v1113
        %v1119 = vlaneseq
        %v1120 = vshrl.u32 %v1119, 7
        %v1121 = vsub.s32 %v933, %v1120
        %v1122 = vrot.slane %v826, %v1121
        %v1123 = vsel %vm938, %v1122, %v1118
        %v1124 = vlaneseq
        %v1125 = vshrl.u32 %v1124, 7
        %v1126 = vsub.s32 %v940, %v1125
        %v1127 = vrot.slane %v827, %v1126
        %v1128 = vsel %vm945, %v1127, %v1123
        %v1129 = vlaneseq
        %v1130 = vshrl.u32 %v1129, 7
        %v1131 = vsub.s32 %v947, %v1130
        %v1132 = vrot.slane %v828, %v1131
        %v1133 = vsel %vm952, %v1132, %v1128
        %v1134 = vlaneseq
        %v1135 = vshrl.u32 %v1134, 7
        %v1136 = vsub.s32 %v954, %v1135
        %v1137 = vrot.slane %v829, %v1136
        %v1138 = vsel %vm959, %v1137, %v1133
        %v1139 = vlaneseq
        %v1140 = vshrl.u32 %v1139, 7
        %v1141 = vsub.s32 %v961, %v1140
        %v1142 = vrot.slane %v830, %v1141
        %v1143 = vsel %vm966, %v1142, %v1138
        %v1144 = vlaneseq
        %v1145 = vshrl.u32 %v1144, 7
        %v1146 = vsub.s32 %v968, %v1145
        %v1147 = vrot.slane %v831, %v1146
        %v1148 = vsel %vm973, %v1147, %v1143
        %v1149 = vlaneseq
        %v1150 = vshrl.u32 %v1149, 7
        %v1151 = vsub.s32 %v975, %v1150
        %v1152 = vrot.slane %v832, %v1151
        %v1153 = vsel %vm980, %v1152, %v1148
        %v1154 = vlaneseq
        %v1155 = vshrl.u32 %v1154, 7
        %v1156 = vsub.s32 %v982, %v1155
        %v1157 = vrot.slane %v833, %v1156
        %v1158 = vsel %vm987, %v1157, %v1153
        %v1159 = vlaneseq
        %v1160 = vshrl.u32 %v1159, 7
        %v1161 = vsub.s32 %v989, %v1160
        %v1162 = vrot.slane %v834, %v1161
        %v1163 = vsel %vm994, %v1162, %v1158
        %v1164 = vlaneseq
        %v1165 = vshrl.u32 %v1164, 7
        %v1166 = vsub.s32 %v996, %v1165
        %v1167 = vrot.slane %v835, %v1166
        %v1168 = vsel %vm1001, %v1167, %v1163
        %v1169 = vlaneseq
        %v1170 = vshrl.u32 %v1169, 7
        %v1171 = vsub.s32 %v1003, %v1170
        %v1172 = vrot.slane %v836, %v1171
        %v1173 = vsel %vm1008, %v1172, %v1168
        %v1174 = vlaneseq
        %v1175 = vshrl.u32 %v1174, 7
        %v1176 = vsub.s32 %v1010, %v1175
        %v1177 = vrot.slane %v837, %v1176
        %v1178 = vsel %vm1015, %v1177, %v1173
        %v1179 = vlaneseq
        %v1180 = vshrl.u32 %v1179, 7
        %v1181 = vsub.s32 %v1017, %v1180
        %v1182 = vrot.slane %v838, %v1181
        %v1183 = vsel %vm1022, %v1182, %v1178
        %v1184 = vlaneseq
        %v1185 = vshrl.u32 %v1184, 7
        %v1186 = vsub.s32 %v1024, %v1185
        %v1187 = vrot.slane %v839, %v1186
        %v1188 = vsel %vm1029, %v1187, %v1183
        %v1189 = vlaneseq
        %v1190 = vshrl.u32 %v1189, 7
        %v1191 = vsub.s32 %v921, %v1190
        %v1192 = vrot.slane %v840, %v1191
        %v1193 = vlaneseq
        %v1194 = vshrl.u32 %v1193, 7
        %v1195 = vsub.s32 %v926, %v1194
        %v1196 = vrot.slane %v841, %v1195
        %v1197 = vsel %vm931, %v1196, %v1192
        %v1198 = vlaneseq
        %v1199 = vshrl.u32 %v1198, 7
        %v1200 = vsub.s32 %v933, %v1199
        %v1201 = vrot.slane %v842, %v1200
        %v1202 = vsel %vm938, %v1201, %v1197
        %v1203 = vlaneseq
        %v1204 = vshrl.u32 %v1203, 7
        %v1205 = vsub.s32 %v940, %v1204
        %v1206 = vrot.slane %v843, %v1205
        %v1207 = vsel %vm945, %v1206, %v1202
        %v1208 = vlaneseq
        %v1209 = vshrl.u32 %v1208, 7
        %v1210 = vsub.s32 %v947, %v1209
        %v1211 = vrot.slane %v844, %v1210
        %v1212 = vsel %vm952, %v1211, %v1207
        %v1213 = vlaneseq
        %v1214 = vshrl.u32 %v1213, 7
        %v1215 = vsub.s32 %v954, %v1214
        %v1216 = vrot.slane %v845, %v1215
        %v1217 = vsel %vm959, %v1216, %v1212
        %v1218 = vlaneseq
        %v1219 = vshrl.u32 %v1218, 7
        %v1220 = vsub.s32 %v961, %v1219
        %v1221 = vrot.slane %v846, %v1220
        %v1222 = vsel %vm966, %v1221, %v1217
        %v1223 = vlaneseq
        %v1224 = vshrl.u32 %v1223, 7
        %v1225 = vsub.s32 %v968, %v1224
        %v1226 = vrot.slane %v847, %v1225
        %v1227 = vsel %vm973, %v1226, %v1222
        %v1228 = vlaneseq
        %v1229 = vshrl.u32 %v1228, 7
        %v1230 = vsub.s32 %v975, %v1229
        %v1231 = vrot.slane %v848, %v1230
        %v1232 = vsel %vm980, %v1231, %v1227
        %v1233 = vlaneseq
        %v1234 = vshrl.u32 %v1233, 7
        %v1235 = vsub.s32 %v982, %v1234
        %v1236 = vrot.slane %v849, %v1235
        %v1237 = vsel %vm987, %v1236, %v1232
        %v1238 = vlaneseq
        %v1239 = vshrl.u32 %v1238, 7
        %v1240 = vsub.s32 %v989, %v1239
        %v1241 = vrot.slane %v850, %v1240
        %v1242 = vsel %vm994, %v1241, %v1237
        %v1243 = vlaneseq
        %v1244 = vshrl.u32 %v1243, 7
        %v1245 = vsub.s32 %v996, %v1244
        %v1246 = vrot.slane %v851, %v1245
        %v1247 = vsel %vm1001, %v1246, %v1242
        %v1248 = vlaneseq
        %v1249 = vshrl.u32 %v1248, 7
        %v1250 = vsub.s32 %v1003, %v1249
        %v1251 = vrot.slane %v852, %v1250
        %v1252 = vsel %vm1008, %v1251, %v1247
        %v1253 = vlaneseq
        %v1254 = vshrl.u32 %v1253, 7
        %v1255 = vsub.s32 %v1010, %v1254
        %v1256 = vrot.slane %v853, %v1255
        %v1257 = vsel %vm1015, %v1256, %v1252
        %v1258 = vlaneseq
        %v1259 = vshrl.u32 %v1258, 7
        %v1260 = vsub.s32 %v1017, %v1259
        %v1261 = vrot.slane %v854, %v1260
        %v1262 = vsel %vm1022, %v1261, %v1257
        %v1263 = vlaneseq
        %v1264 = vshrl.u32 %v1263, 7
        %v1265 = vsub.s32 %v1024, %v1264
        %v1266 = vrot.slane %v855, %v1265
        %v1267 = vsel %vm1029, %v1266, %v1262
        %vm1268 = vcmask 1041409
        %v1269 = vsel %vm1268, %v1109, %v1030
        %vm1270 = vcmask 1042434
        %v1271 = vsel %vm1270, %v1188, %v1269
        %vm1272 = vcmask 1043459
        %v1273 = vsel %vm1272, %v1267, %v1271
        %1275 = vst [vmem:[%s521] sm:$0xf] %v1273
        %v1276 = vld [vmem:[#allocation2] sm:$0xf]
        %v1277 = vld [vmem:[%s528] sm:$0xff]
        %v1278 = vld [vmem:[%s528 + $0x8] sm:$0xff]
        %v1279 = vld [vmem:[%s528 + $0x10] sm:$0xff]
        %v1280 = vld [vmem:[%s528 + $0x18] sm:$0xff]
        %v1281 = vld [vmem:[%s528 + $0x20] sm:$0xff]
        %v1282 = vld [vmem:[%s528 + $0x28] sm:$0xff]
        %v1283 = vld [vmem:[%s528 + $0x30] sm:$0xff]
        %v1284 = vld [vmem:[%s528 + $0x38] sm:$0xff]
        %v1285 = vld [vmem:[%s528 + $0x40] sm:$0xff]
        %v1286 = vld [vmem:[%s528 + $0x48] sm:$0xff]
        %v1287 = vld [vmem:[%s528 + $0x50] sm:$0xff]
        %v1288 = vld [vmem:[%s528 + $0x58] sm:$0xff]
        %v1289 = vld [vmem:[%s528 + $0x60] sm:$0xff]
        %v1290 = vld [vmem:[%s528 + $0x68] sm:$0xff]
        %v1291 = vld [vmem:[%s528 + $0x70] sm:$0xff]
        %v1292 = vld [vmem:[%s528 + $0x78] sm:$0xff]
        %1293 = vmatprep.subr.mxu0 0.0
        %1294 = vmatpush1.msra.mxu0 %v1277
        %1295 = vmatprep.subr.mxu0 0.0
        %1296 = vmatpush1.msra.mxu0 %v1278
        %1297 = vmatprep.subr.mxu0 0.0
        %1298 = vmatpush1.msra.mxu0 %v1279
        %1299 = vmatprep.subr.mxu0 0.0
        %1300 = vmatpush1.msra.mxu0 %v1280
        %1301 = vmatprep.subr.mxu0 0.0
        %1302 = vmatpush1.msra.mxu0 %v1281
        %1303 = vmatprep.subr.mxu0 0.0
        %1304 = vmatpush1.msra.mxu0 %v1282
        %1305 = vmatprep.subr.mxu0 0.0
        %1306 = vmatpush1.msra.mxu0 %v1283
        %1307 = vmatprep.subr.mxu0 0.0
        %1308 = vmatpush1.msra.mxu0 %v1284
        %1309 = vmatprep.subr.mxu0 0.0
        %1310 = vmatpush1.msra.mxu0 %v1285
        %1311 = vmatprep.subr.mxu0 0.0
        %1312 = vmatpush1.msra.mxu0 %v1286
        %1313 = vmatprep.subr.mxu0 0.0
        %1314 = vmatpush1.msra.mxu0 %v1287
        %1315 = vmatprep.subr.mxu0 0.0
        %1316 = vmatpush1.msra.mxu0 %v1288
        %1317 = vmatprep.subr.mxu0 0.0
        %1318 = vmatpush1.msra.mxu0 %v1289
        %1319 = vmatprep.subr.mxu0 0.0
        %1320 = vmatpush1.msra.mxu0 %v1290
        %1321 = vmatprep.subr.mxu0 0.0
        %1322 = vmatpush1.msra.mxu0 %v1291
        %1323 = vmatprep.subr.mxu0 0.0
        %1324 = vmatpush1.msra.mxu0 %v1292
        %1325 = vmatprep.subr.mxu0 0.0
        %1326 = vmatpush1.msra.mxu0 0.0
        %1327 = vmatprep.subr.mxu0 0.0
        %1328 = vmatpush1.msra.mxu0 0.0
        %1329 = vmatprep.subr.mxu0 0.0
        %1330 = vmatpush1.msra.mxu0 0.0
        %1331 = vmatprep.subr.mxu0 0.0
        %1332 = vmatpush1.msra.mxu0 0.0
        %1333 = vmatprep.subr.mxu0 0.0
        %1334 = vmatpush1.msra.mxu0 0.0
        %1335 = vmatprep.subr.mxu0 0.0
        %1336 = vmatpush1.msra.mxu0 0.0
        %1337 = vmatprep.subr.mxu0 0.0
        %1338 = vmatpush1.msra.mxu0 0.0
        %1339 = vmatprep.subr.mxu0 0.0
        %1340 = vmatpush1.msra.mxu0 0.0
        %1341 = vmatprep.subr.mxu0 0.0
        %1342 = vmatpush1.msra.mxu0 0.0
        %1343 = vmatprep.subr.mxu0 0.0
        %1344 = vmatpush1.msra.mxu0 0.0
        %1345 = vmatprep.subr.mxu0 0.0
        %1346 = vmatpush1.msra.mxu0 0.0
        %1347 = vmatprep.subr.mxu0 0.0
        %1348 = vmatpush1.msra.mxu0 0.0
        %1349 = vmatprep.subr.mxu0 0.0
        %1350 = vmatpush1.msra.mxu0 0.0
        %1351 = vmatprep.subr.mxu0 0.0
        %1352 = vmatpush1.msra.mxu0 0.0
        %1353 = vmatprep.subr.mxu0 0.0
        %1354 = vmatpush1.msra.mxu0 0.0
        %1355 = vmatprep.subr.mxu0 0.0
        %1356 = vmatpush1.msra.mxu0 0.0
        %1357 = vmatprep.mubr.f32.mxu0 0.0
        %1358 = vmatmul.mubr.f32.gmra.mrb[0].mxu0 %v1273
        %v1359 = vpop.f32.mrb[0].mxu0
        %v1360 = vadd.f32 0.0, %v1359
        %v1361 = vpop.f32.mrb[0].mxu0
        %1362 = vdwg.mxu0
        %v1363 = vadd.f32 %v1276, %v1360
        %1364 = vst [vmem:[#allocation2] sm:$0xf] %v1363
        %p1365 = scmp.eq.s32.totalorder %s25, 1
        // Predicated region
        $region75: #{tpu_custom_call.1} parent=65 // pred_check
          %p1366 = pneg %p1365
        $region76: #{tpu_custom_call.1} parent=65 // pred_check_branch
          %1368 = sbr.rel (%p1366) target = $region78
        $region77: #{tpu_custom_call.1} parent=65 // pred_region
          %v1369 = vld [vmem:[#allocation2] sm:$0xf]
          %v1370 = vld [vmem:[%s2] sm:$0x1]
          %v1372 = vlaneseq
          %v1373 = vshrl.u32 %v1372, 7
          %v1374 = vsub.s32 0, %v1373
          %v1375 = vrot.slane %v1370, %v1374
          %v1377 = vadd.f32 %v1369, %v1375
          %1378 = vst [vmem:[#allocation4] sm:$0xf] %v1377
        $region78: #{tpu_custom_call.1} parent=65 // pred_fallthru
          _
        %s1379 = sand.u32 %s143, 1
        %s1380 = scalar_lea.sflag [#allocation7], %s1379
        %s1381 = sand.u32 %s143, 1
        %s1382 = smul.addr %s1381, 4
        %s1383 = scalar_lea.vmem [#allocation6], %s1382
        // Predicated region
        $region79: #{tpu_custom_call.1} parent=65 // pred_check
          %p1384 = pneg %p125
        $region80: #{tpu_custom_call.1} parent=65 // pred_check_branch
          %1386 = sbr.rel (%p1384) target = $region82
        $region81: #{tpu_custom_call.1} parent=65 // pred_region
          %s1388 = ssub.s32 64, 64
          %1389 = vsyncadd [#allocation5], %s1388
          %s1390 = smul.addr %s24, 64
          %s1391 = scalar_lea.hbm %s3, %s1390
          %s1393 = sshll.u32 [#allocation4], 4
          %s1394 = int_to_ptr.vmem [resolvable:$true] %s1393
          %1396 = dma.vmem_to_hbm [thread:$0]  %s1394, 64, %s1391, [#allocation5]
        $region82: #{tpu_custom_call.1} parent=65 // pred_fallthru
          _
        // Predicated region
        $region83: #{tpu_custom_call.1} parent=65 // pred_check
          %p1397 = pneg %p153
        $region84: #{tpu_custom_call.1} parent=65 // pred_check_branch
          %1399 = sbr.rel (%p1397) target = $region86
        $region85: #{tpu_custom_call.1} parent=65 // pred_region
          %s1401 = ssub.s32 64, 64
          %1402 = vsyncadd %s1380, %s1401
          %s1403 = smul.addr %s24, 2
          %s1404 = sadd.s32 %s25, %s1403
          %s1405 = smul.addr %s1404, 64
          %s1406 = scalar_lea.hbm %s4, %s1405
          %s1408 = sshll.u32 %s1383, 4
          %s1409 = int_to_ptr.vmem [resolvable:$true] %s1408
          %1411 = dma.vmem_to_hbm [thread:$0]  %s1409, 64, %s1406, %s1380
        $region86: #{tpu_custom_call.1} parent=65 // pred_fallthru
          _
        // Predicated region
        $region87: #{tpu_custom_call.1} parent=65 // pred_check
          %p1412 = pneg %p125
        $region88: #{tpu_custom_call.1} parent=65 // pred_check_branch
          %1414 = sbr.rel (%p1412) target = $region90
        $region89: #{tpu_custom_call.1} parent=65 // pred_region
          %1415 = dma.done [#allocation5], 64
        $region90: #{tpu_custom_call.1} parent=65 // pred_fallthru
          _
      $region66: #{tpu_custom_call.1} parent=5 // pred_fallthru
        _
      %p1416 = scmp.le.s32.totalorder 2, %s15
      // Predicated region
      $region91: #{tpu_custom_call.1} parent=5 // pred_check
        %p1417 = pneg %p1416
      $region92: #{tpu_custom_call.1} parent=5 // pred_check_branch
        %1419 = sbr.rel (%p1417) target = $region94
      $region93: #{tpu_custom_call.1} parent=5 // pred_region
        %s1420 = ssub.s32 %s15, 2
        // Predicated region
        $region95: #{tpu_custom_call.1} parent=93 // pred_check
          %p1421 = pneg %p159
        $region96: #{tpu_custom_call.1} parent=93 // pred_check_branch
          %1423 = sbr.rel (%p1421) target = $region98
        $region97: #{tpu_custom_call.1} parent=93 // pred_region
          %s1424 = sand.u32 %s144, 1
          %s1425 = scalar_lea.sflag [#allocation7], %s1424
          %s1426 = sand.u32 %s144, 1
          %s1427 = smul.addr %s1426, 4
          %s1428 = scalar_lea.vmem [#allocation6], %s1427
          %1429 = dma.done %s1425, 64
        $region98: #{tpu_custom_call.1} parent=93 // pred_fallthru
          _
      $region94: #{tpu_custom_call.1} parent=5 // pred_fallthru
        _
    $region6: #{tpu_custom_call.1} parent=1 // loop_footer
      %s19 = sadd.s32 1, %s15
    $region7: #{tpu_custom_call.1} parent=1 // loop_footer_branch
      %14 = sbr.rel target = $region3
    $region8: #{tpu_custom_call.1} parent=1 // loop_exit
      _
    %1430 = vsyncpa [#allocation5], 1
    %s1431 = scalar_lea.sflag [#allocation5], 1
    %1432 = vsyncpa %s1431, 1
    %1433 = vsyncpa [#allocation7], 1
    %s1434 = scalar_lea.sflag [#allocation7], 1
    %1435 = vsyncpa %s1434, 1

</llo_original>
